<compile_context>
chip_gen: v7x
topology: tpu7x:2x2x1
jax: 0.10.0
libtpu: 0.0.40
codegen_flags: <defaults>
</compile_context>

<pallas_src>
import functools

import jax
import jax.numpy as jnp
from jax.experimental import pallas as pl
from jax.experimental.pallas import tpu as pltpu

_LN_EPS = 1e-5
_INV_SQRT2 = 0.7071067811865476


# ---------------------------------------------------------------------------
# small helpers
# ---------------------------------------------------------------------------
def _round_up(x, m):
    return (x + m - 1) // m * m


def _row_tile(m_rows, tm):
    # 16-row alignment: multiple of 8 (f32 sublane) and 16 (bf16 sublane packing).
    return min(_round_up(tm, 16), _round_up(m_rows, 16))


def _col_tile(dim, target, align=128):
    """Largest multiple of `align` that divides `dim` and is <= target; else dim."""
    best = None
    c = align
    limit = min(target, dim)
    while c <= limit:
        if dim % c == 0:
            best = c
        c += align
    return best if best is not None else dim


def _vmem_limit_bytes():
    """Generation-aware scoped-VMEM budget (leave headroom under physical VMEM)."""
    try:
        kind = jax.devices()[0].device_kind.lower()
    except Exception:
        return 48 * 1024 * 1024
    if "v7" in kind:
        return 48 * 1024 * 1024      # v7x: 64 MiB physical per TC
    return 96 * 1024 * 1024          # v5e / v6e / v4: 128 MiB physical


def _ln_f32(x_ref, g_ref, b_ref):
    """LayerNorm of the full (tm, E) block in f32 (returns f32)."""
    x = x_ref[...].astype(jnp.float32)
    mu = jnp.mean(x, axis=-1, keepdims=True)
    xc = x - mu
    var = jnp.mean(xc * xc, axis=-1, keepdims=True)
    inv = jax.lax.rsqrt(var + _LN_EPS)
    return xc * inv * g_ref[...].astype(jnp.float32) + b_ref[...].astype(jnp.float32)


# ---------------------------------------------------------------------------
# kernels
# ---------------------------------------------------------------------------
def _ln_linear_kernel(x_ref, g_ref, b_ref, w_ref, bias_ref, o_ref, xn_ref):
    """out[i, n] = LN(x[i]) @ W[:, n] + bias[n].

    LN is computed once per row tile (at n == 0) into a VMEM scratch (activation
    dtype) and reused across the tiled N axis.
    """
    n = pl.program_id(1)

    @pl.when(n == 0)
    def _():
        xn_ref[...] = _ln_f32(x_ref, g_ref, b_ref).astype(xn_ref.dtype)

    y = jnp.dot(xn_ref[...], w_ref[...], preferred_element_type=jnp.float32)
    y = y + bias_ref[...].astype(jnp.float32)
    o_ref[...] = y.astype(o_ref.dtype)


def _attention_kernel(qkv_ref, o_ref, *, num_heads, head_dim):
    """Causal MHA for one batch element.

    qkv_ref: (S, 3E) block of the fused QKV projection (cols [0,E)=Q, [E,2E)=K,
    [2E,3E)=V, each split into heads along the column axis).  o_ref: (S, E),
    already laid out so no head transpose is needed afterwards (lane-dense store).
    """
    qkv = qkv_ref[...]                       # native dtype (bf16-ready)
    S = qkv.shape[0]
    E = num_heads * head_dim
    inv_scale = 1.0 / (float(head_dim) ** 0.5)

    row = jax.lax.broadcasted_iota(jnp.int32, (S, S), 0)
    col = jax.lax.broadcasted_iota(jnp.int32, (S, S), 1)
    causal = col <= row                      # diagonal always unmasked -> no NaN rows

    ctxs = []
    for h in range(num_heads):
        q = qkv[:, h * head_dim:(h + 1) * head_dim]
        k = qkv[:, E + h * head_dim:E + (h + 1) * head_dim]
        v = qkv[:, 2 * E + h * head_dim:2 * E + (h + 1) * head_dim]
        # MXU matmuls in native dtype; softmax math in f32.
        s = jnp.dot(q, k.T, preferred_element_type=jnp.float32) * inv_scale
        s = jnp.where(causal, s, -jnp.inf)
        m = jnp.max(s, axis=-1, keepdims=True)
        p = jnp.exp(s - m)
        l = jnp.sum(p, axis=-1, keepdims=True)
        # TODO(synk): attention dropout (train mode) not emitted; eval semantics.
        ctx = jnp.dot(p.astype(qkv.dtype), v, preferred_element_type=jnp.float32)
        # Normalize after PV matmul: S*Dh multiplies (+ S exact divides) instead of
        # S*S divides.  Exact reciprocal kept for f32 parity with the reference.
        ctx = ctx * (1.0 / l)
        ctxs.append(ctx)
    # Single lane-dense (S, E) store.
    o_ref[...] = jnp.concatenate(ctxs, axis=-1).astype(o_ref.dtype)


def _linear_residual_kernel(x_ref, w_ref, b_ref, r_ref, o_ref):
    """Attention output projection with the residual add fused in."""
    y = jnp.dot(x_ref[...], w_ref[...], preferred_element_type=jnp.float32)
    y = y + b_ref[...].astype(jnp.float32) + r_ref[...].astype(jnp.float32)
    o_ref[...] = y.astype(o_ref.dtype)


def _ln_mlp_kernel(x_ref, g_ref, b_ref, w1_ref, b1_ref, w2_ref, b2_ref, o_ref,
                   xn_ref, acc_ref):
    """out[i] = x[i] + GELU(LN2(x[i]) @ W1 + b1) @ W2 + b2, tiled over F.

    x_ref:  (TM, E)  both LN2 input and the residual
    w1_ref: (E, TF)  b1_ref: (1, TF)   w2_ref: (TF, E)  b2_ref: (1, E)
    xn_ref: (TM, E)  LN2(x) cached in activation dtype (computed at f == 0)
    acc_ref:(TM, E)  f32 accumulator over the F axis
    """
    f = pl.program_id(1)

    @pl.when(f == 0)
    def _():
        xn_ref[...] = _ln_f32(x_ref, g_ref, b_ref).astype(xn_ref.dtype)
        acc_ref[...] = jnp.zeros_like(acc_ref)

    h = jnp.dot(xn_ref[...], w1_ref[...], preferred_element_type=jnp.float32)
    h = h + b1_ref[...].astype(jnp.float32)
    # exact (erf) GELU, matching torch.nn.functional.gelu default
    h = 0.5 * h * (1.0 + jax.lax.erf(h * _INV_SQRT2))
    # TODO(synk): MLP dropout (train mode) not emitted; eval semantics.
    # NOTE: h is cast back to the activation dtype before the W2 matmul (intentional
    # precision trade-off when running bf16 activations; exact for f32).
    acc_ref[...] += jnp.dot(h.astype(xn_ref.dtype), w2_ref[...],
                            preferred_element_type=jnp.float32)

    @pl.when(f == pl.num_programs(1) - 1)
    def _():
        y = acc_ref[...] + b2_ref[...].astype(jnp.float32) + x_ref[...].astype(jnp.float32)
        o_ref[...] = y.astype(o_ref.dtype)


# ---------------------------------------------------------------------------
# pallas_call wrappers (all operate on row-padded (Mp, ...) buffers)
# ---------------------------------------------------------------------------
def _ln_linear(x2d, g, b, w, bias, *, tm_eff, tn):
    Mp, E = x2d.shape
    N = w.shape[1]
    tn_eff = _col_tile(N, tn)
    return pl.pallas_call(
        _ln_linear_kernel,
        out_shape=jax.ShapeDtypeStruct((Mp, N), x2d.dtype),
        grid_spec=pltpu.PrefetchScalarGridSpec(
            num_scalar_prefetch=0,
            grid=(Mp // tm_eff, N // tn_eff),
            in_specs=[
                pl.BlockSpec((tm_eff, E), lambda i, n: (i, 0)),            # x rows
                pl.BlockSpec((1, E), lambda i, n: (0, 0),                  # ln1 gamma
                             pipeline_mode=pl.Buffered(1)),
                pl.BlockSpec((1, E), lambda i, n: (0, 0),                  # ln1 beta
                             pipeline_mode=pl.Buffered(1)),
                pl.BlockSpec((E, tn_eff), lambda i, n: (0, n)),            # W_qkv chunk
                pl.BlockSpec((1, tn_eff), lambda i, n: (0, n)),            # b_qkv chunk
            ],
            out_specs=pl.BlockSpec((tm_eff, tn_eff), lambda i, n: (i, n)),
            scratch_shapes=[pltpu.VMEM((tm_eff, E), x2d.dtype)],
        ),
        compiler_params=pltpu.CompilerParams(
            dimension_semantics=("parallel", "arbitrary"),
            vmem_limit_bytes=_vmem_limit_bytes()),
    )(x2d, g.reshape(1, E), b.reshape(1, E), w, bias.reshape(1, N))


def _causal_attention(qkv, *, batch, seq_len, num_heads, head_dim):
    # Grid over batch only (>= 2 for 2-TC sharding on v7x when batch >= 2); rows of
    # the padded buffer beyond batch*seq_len are never read or written here, and all
    # downstream ops are row-wise, so they cannot contaminate valid rows.
    Mp = qkv.shape[0]
    E = num_heads * head_dim
    kern = functools.partial(_attention_kernel, num_heads=num_heads, head_dim=head_dim)
    return pl.pallas_call(
        kern,
        out_shape=jax.ShapeDtypeStruct((Mp, E), qkv.dtype),
        grid_spec=pltpu.PrefetchScalarGridSpec(
            num_scalar_prefetch=0,
            grid=(batch,),
            in_specs=[pl.BlockSpec((seq_len, 3 * E), lambda bidx: (bidx, 0))],
            out_specs=pl.BlockSpec((seq_len, E), lambda bidx: (bidx, 0)),
        ),
        compiler_params=pltpu.CompilerParams(
            dimension_semantics=("parallel",),
            vmem_limit_bytes=_vmem_limit_bytes()),
    )(qkv)


def _linear_residual(x2d, w, bias, r2d, *, tm_eff):
    Mp, E = x2d.shape
    N = w.shape[1]
    return pl.pallas_call(
        _linear_residual_kernel,
        out_shape=jax.ShapeDtypeStruct((Mp, N), x2d.dtype),
        grid_spec=pltpu.PrefetchScalarGridSpec(
            num_scalar_prefetch=0,
            grid=(Mp // tm_eff,),
            in_specs=[
                pl.BlockSpec((tm_eff, E), lambda i: (i, 0)),               # ctx rows
                pl.BlockSpec((E, N), lambda i: (0, 0),                     # W_o (const)
                             pipeline_mode=pl.Buffered(1)),
                pl.BlockSpec((1, N), lambda i: (0, 0),                     # b_o (const)
                             pipeline_mode=pl.Buffered(1)),
                pl.BlockSpec((tm_eff, N), lambda i: (i, 0)),               # residual
            ],
            out_specs=pl.BlockSpec((tm_eff, N), lambda i: (i, 0)),
        ),
        compiler_params=pltpu.CompilerParams(
            dimension_semantics=("parallel",),
            vmem_limit_bytes=_vmem_limit_bytes()),
    )(x2d, w, bias.reshape(1, N), r2d)


def _ln_mlp(x2d, g, b, w1, b1, w2, b2, *, tm_eff, tf):
    Mp, E = x2d.shape
    F_dim = w1.shape[1]
    tf_eff = _col_tile(F_dim, tf)
    n_i = Mp // tm_eff

    itemsize = jnp.dtype(x2d.dtype).itemsize
    cost = pl.CostEstimate(
        flops=4 * Mp * E * F_dim,
        transcendentals=Mp * F_dim,
        bytes_accessed=itemsize * (2 * Mp * E + n_i * (2 * E * F_dim + F_dim + E)),
    )

    return pl.pallas_call(
        _ln_mlp_kernel,
        out_shape=jax.ShapeDtypeStruct((Mp, E), x2d.dtype),
        grid_spec=pltpu.PrefetchScalarGridSpec(
            num_scalar_prefetch=0,
            grid=(n_i, F_dim // tf_eff),
            in_specs=[
                pl.BlockSpec((tm_eff, E), lambda i, f: (i, 0)),            # x (LN + resid)
                pl.BlockSpec((1, E), lambda i, f: (0, 0),                  # ln2 gamma
                             pipeline_mode=pl.Buffered(1)),
                pl.BlockSpec((1, E), lambda i, f: (0, 0),                  # ln2 beta
                             pipeline_mode=pl.Buffered(1)),
                pl.BlockSpec((E, tf_eff), lambda i, f: (0, f)),            # W1 F-chunk
                pl.BlockSpec((1, tf_eff), lambda i, f: (0, f)),            # b1 F-chunk
                pl.BlockSpec((tf_eff, E), lambda i, f: (f, 0)),            # W2 F-chunk
                pl.BlockSpec((1, E), lambda i, f: (0, 0),                  # b2 (const)
                             pipeline_mode=pl.Buffered(1)),
            ],
            out_specs=pl.BlockSpec((tm_eff, E), lambda i, f: (i, 0)),
            scratch_shapes=[pltpu.VMEM((tm_eff, E), x2d.dtype),
                            pltpu.VMEM((tm_eff, E), jnp.float32)],
        ),
        compiler_params=pltpu.CompilerParams(
            dimension_semantics=("parallel", "arbitrary"),
            vmem_limit_bytes=_vmem_limit_bytes()),
        cost_estimate=cost,
    )(x2d, g.reshape(1, E), b.reshape(1, E), w1, b1.reshape(1, F_dim),
      w2, b2.reshape(1, E))


# ---------------------------------------------------------------------------
# full transformer block forward
# ---------------------------------------------------------------------------
@functools.partial(jax.jit, static_argnames=("num_heads", "tm", "tn", "tf"))
def transformer_block_forward(x, params, *, num_heads, tm=256, tn=512, tf=512):
    """x: (B, S, E).  Returns (B, S, E).  Eval-mode (dropout = identity)."""
    B, S, E = x.shape
    H = num_heads
    Dh = E // H
    M = B * S
    x2d = x.reshape(M, E)

    # Pad rows once; every row-tiled kernel runs on the padded buffer.
    tm_eff = _row_tile(M, tm)
    Mp = _round_up(M, tm_eff)
    if Mp != M:
        x2d = jnp.pad(x2d, ((0, Mp - M), (0, 0)))

    # --- attention sublayer: x = x + W_o @ Attn(LN1(x)) ---
    qkv = _ln_linear(x2d, params["ln1_g"], params["ln1_b"],
                     params["w_qkv"], params["b_qkv"], tm_eff=tm_eff, tn=tn)  # (Mp, 3E)
    ctx = _causal_attention(qkv, batch=B, seq_len=S, num_heads=H, head_dim=Dh)  # (Mp, E)
    x2d = _linear_residual(ctx, params["w_o"], params["b_o"], x2d, tm_eff=tm_eff)

    # --- MLP sublayer: x = x + MLP(LN2(x)) (LN2 + both matmuls + residual fused) ---
    x2d = _ln_mlp(x2d, params["ln2_g"], params["ln2_b"],
                  params["w1"], params["b1"], params["w2"], params["b2"],
                  tm_eff=tm_eff, tf=tf)

    if Mp != M:
        x2d = x2d[:M]
    return x2d.reshape(B, S, E)


# ---------------------------------------------------------------------------
# params + reference
# ---------------------------------------------------------------------------
def init_params(key, emb, ff, dtype=jnp.float32):
    """nn.Linear-style init (U(-1/sqrt(in), 1/sqrt(in))); weights stored as (in, out)."""
    keys = jax.random.split(key, 12)

    def lin(kw, kb, fan_in, fan_out):
        bound = 1.0 / (fan_in ** 0.5)
        w = jax.random.uniform(kw, (fan_in, fan_out), dtype, -bound, bound)
        b = jax.random.uniform(kb, (fan_out,), dtype, -bound, bound)
        return w, b

    wq, bq = lin(keys[0], keys[1], emb, emb)
    wk, bk = lin(keys[2], keys[3], emb, emb)
    wv, bv = lin(keys[4], keys[5], emb, emb)
    wo, bo = lin(keys[6], keys[7], emb, emb)
    w1, b1 = lin(keys[8], keys[9], emb, ff)
    w2, b2 = lin(keys[10], keys[11], ff, emb)
    return dict(
        ln1_g=jnp.ones((emb,), dtype), ln1_b=jnp.zeros((emb,), dtype),
        ln2_g=jnp.ones((emb,), dtype), ln2_b=jnp.zeros((emb,), dtype),
        w_qkv=jnp.concatenate([wq, wk, wv], axis=1),
        b_qkv=jnp.concatenate([bq, bk, bv], axis=0),
        w_o=wo, b_o=bo, w1=w1, b1=b1, w2=w2, b2=b2,
    )


def reference_block(x, params, num_heads):
    B, S, E = x.shape
    H = num_heads
    Dh = E // H

    def ln(t, g, b):
        mu = jnp.mean(t, -1, keepdims=True)
        var = jnp.mean((t - mu) ** 2, -1, keepdims=True)
        return (t - mu) / jnp.sqrt(var + _LN_EPS) * g + b

    h = ln(x, params["ln1_g"], params["ln1_b"])
    qkv = h @ params["w_qkv"] + params["b_qkv"]
    q, k, v = jnp.split(qkv, 3, axis=-1)

    def heads(t):
        return t.reshape(B, S, H, Dh).transpose(0, 2, 1, 3)

    q, k, v = heads(q), heads(k), heads(v)
    s = jnp.einsum("bhqd,bhkd->bhqk", q, k) / (Dh ** 0.5)
    mask = jnp.tril(jnp.ones((S, S), bool))
    s = jnp.where(mask, s, -jnp.inf)
    p = jax.nn.softmax(s, axis=-1)
    ctx = jnp.einsum("bhqk,bhkd->bhqd", p, v)
    ctx = ctx.transpose(0, 2, 1, 3).reshape(B, S, E)
    x = x + ctx @ params["w_o"] + params["b_o"]

    h2 = ln(x, params["ln2_g"], params["ln2_b"])
    hm = h2 @ params["w1"] + params["b1"]
    hm = 0.5 * hm * (1.0 + jax.lax.erf(hm * _INV_SQRT2))
    return x + hm @ params["w2"] + params["b2"]


if __name__ == "__main__":
    # Small config consistent with the module: emb=32, ff=128, heads=4, batch=2, seq=8.
    B, S, E, FF, H = 2, 8, 32, 128, 4

    key = jax.random.PRNGKey(0)
    kx, kp = jax.random.split(key)
    x = jax.random.normal(kx, (B, S, E), jnp.float32)
    params = init_params(kp, E, FF)

    out = transformer_block_forward(x, params, num_heads=H)
    jax.block_until_ready(out)

    ref = reference_block(x, params, H)
    assert out.shape == (B, S, E)
    err = float(jnp.max(jnp.abs(out - ref)))
    assert jnp.allclose(out, ref, atol=2e-4, rtol=2e-4), f"max abs err = {err}"

    print("KERNEL_OK")
</pallas_src>

<mosaic_0001>
module attributes {stable_mosaic.version = 11 : i64} {
  func.func @_linear_residual_kernel(%arg0: i32, %arg1: memref<16x32xf32, #tpu.memory_space<vmem>>, %arg2: memref<32x32xf32, #tpu.memory_space<vmem>>, %arg3: memref<1x32xf32, #tpu.memory_space<vmem>>, %arg4: memref<16x32xf32, #tpu.memory_space<vmem>>, %arg5: memref<16x32xf32, #tpu.memory_space<vmem>>) attributes {dimension_semantics = [#tpu.dimension_semantics<parallel>], iteration_bounds = array<i64: 1>, scalar_prefetch = 0 : i64, scratch_operands = 0 : i64, tpu.core_type = #tpu.core_type<tc>, window_params = [{transform_indices = @transform_0, window_bounds = array<i64: 16, 32>}, {pipeline_mode = #tpu.pipeline_mode<synchronous>, transform_indices = @transform_1, window_bounds = array<i64: 32, 32>}, {pipeline_mode = #tpu.pipeline_mode<synchronous>, transform_indices = @transform_2, window_bounds = array<i64: 1, 32>}, {transform_indices = @transform_3, window_bounds = array<i64: 16, 32>}, {transform_indices = @transform_4, window_bounds = array<i64: 16, 32>}]} {
    %c0 = arith.constant 0 : index
    %c0_0 = arith.constant 0 : index
    %0 = vector.load %arg1[%c0, %c0_0] : memref<16x32xf32, #tpu.memory_space<vmem>>, vector<16x32xf32>
    %c0_1 = arith.constant 0 : index
    %c0_2 = arith.constant 0 : index
    %1 = vector.load %arg2[%c0_1, %c0_2] : memref<32x32xf32, #tpu.memory_space<vmem>>, vector<32x32xf32>
    %cst = arith.constant dense<0.000000e+00> : vector<16x32xf32>
    %2 = tpu.matmul %0, %1, %cst {dimension_numbers = #tpu.dot_dimension_numbers<[1], [0], [0], [1], [0, 0, 1, 1], [], []>} : vector<16x32xf32>, vector<32x32xf32>, vector<16x32xf32> -> vector<16x32xf32>
    %c0_3 = arith.constant 0 : index
    %c0_4 = arith.constant 0 : index
    %3 = vector.load %arg3[%c0_3, %c0_4] : memref<1x32xf32, #tpu.memory_space<vmem>>, vector<1x32xf32>
    %4 = vector.broadcast %3 : vector<1x32xf32> to vector<16x32xf32>
    %5 = arith.addf %2, %4 : vector<16x32xf32>
    %c0_5 = arith.constant 0 : index
    %c0_6 = arith.constant 0 : index
    %6 = vector.load %arg4[%c0_5, %c0_6] : memref<16x32xf32, #tpu.memory_space<vmem>>, vector<16x32xf32>
    %7 = arith.addf %5, %6 : vector<16x32xf32>
    %c0_7 = arith.constant 0 : index
    %c0_8 = arith.constant 0 : index
    %8 = vector.load %arg5[%c0_7, %c0_8] : memref<16x32xf32, #tpu.memory_space<vmem>>, vector<16x32xf32>
    tpu.vector_store %arg5[%c0_7, %c0_8], %7 {strides = array<i32>} : memref<16x32xf32, #tpu.memory_space<vmem>>, vector<16x32xf32>,
    return
  }
  func.func @transform_0(%arg0: i32) -> (i32, i32) {
    %c0_i32 = arith.constant 0 : i32
    %c0_i32_0 = arith.constant 0 : i32
    return %arg0, %c0_i32 : i32, i32
  }
  func.func @transform_1(%arg0: i32) -> (i32, i32) {
    %c0_i32 = arith.constant 0 : i32
    %c0_i32_0 = arith.constant 0 : i32
    %c0_i32_1 = arith.constant 0 : i32
    return %c0_i32, %c0_i32_0 : i32, i32
  }
  func.func @transform_2(%arg0: i32) -> (i32, i32) {
    %c0_i32 = arith.constant 0 : i32
    %c0_i32_0 = arith.constant 0 : i32
    %c0_i32_1 = arith.constant 0 : i32
    return %c0_i32, %c0_i32_0 : i32, i32
  }
  func.func @transform_3(%arg0: i32) -> (i32, i32) {
    %c0_i32 = arith.constant 0 : i32
    %c0_i32_0 = arith.constant 0 : i32
    return %arg0, %c0_i32 : i32, i32
  }
  func.func @transform_4(%arg0: i32) -> (i32, i32) {
    %c0_i32 = arith.constant 0 : i32
    %c0_i32_0 = arith.constant 0 : i32
    return %arg0, %c0_i32 : i32, i32
  }
}

module attributes {stable_mosaic.version = 11 : i64} {
  func.func @_attention_kernel(%arg0: i32, %arg1: memref<8x96xf32, #tpu.memory_space<vmem>>, %arg2: memref<8x32xf32, #tpu.memory_space<vmem>>) attributes {dimension_semantics = [#tpu.dimension_semantics<parallel>], iteration_bounds = array<i64: 2>, scalar_prefetch = 0 : i64, scratch_operands = 0 : i64, tpu.core_type = #tpu.core_type<tc>, window_params = [{transform_indices = @transform_0, window_bounds = array<i64: 8, 96>}, {transform_indices = @transform_1, window_bounds = array<i64: 8, 32>}]} {
    %c0 = arith.constant 0 : index
    %c0_0 = arith.constant 0 : index
    %0 = vector.load %arg1[%c0, %c0_0] : memref<8x96xf32, #tpu.memory_space<vmem>>, vector<8x96xf32>
    %1 = tpu.iota {dimensions = array<i32: 0>} : vector<8x8xi32>
    %2 = tpu.iota {dimensions = array<i32: 1>} : vector<8x8xi32>
    %3 = arith.cmpi sle, %2, %1 : vector<8x8xi32>
    %4 = vector.extract_strided_slice %0 {offsets = [0, 0], sizes = [8, 8], strides = [1, 1]} : vector<8x96xf32> to vector<8x8xf32>
    %5 = vector.extract_strided_slice %0 {offsets = [0, 32], sizes = [8, 8], strides = [1, 1]} : vector<8x96xf32> to vector<8x8xf32>
    %6 = vector.extract_strided_slice %0 {offsets = [0, 64], sizes = [8, 8], strides = [1, 1]} : vector<8x96xf32> to vector<8x8xf32>
    %7 = tpu.transpose %5, [1, 0] : vector<8x8xf32> -> vector<8x8xf32>
    %cst = arith.constant dense<0.000000e+00> : vector<8x8xf32>
    %8 = tpu.matmul %4, %7, %cst {dimension_numbers = #tpu.dot_dimension_numbers<[1], [0], [0], [1], [0, 0, 1, 1], [], []>} : vector<8x8xf32>, vector<8x8xf32>, vector<8x8xf32> -> vector<8x8xf32>
    %cst_1 = arith.constant 0.353553385 : f32
    %9 = vector.broadcast %cst_1 : f32 to vector<8x8xf32>
    %10 = arith.mulf %8, %9 : vector<8x8xf32>
    %cst_2 = arith.constant 0xFF800000 : f32
    %11 = vector.broadcast %cst_2 : f32 to vector<8x8xf32>
    %12 = arith.select %3, %10, %11 : vector<8x8xi1>, vector<8x8xf32>
    %cst_3 = arith.constant dense<0xFF800000> : vector<8xf32>
    %13 = vector.multi_reduction <maximumf>, %12, %cst_3 [1] : vector<8x8xf32> to vector<8xf32>
    %14 = vector.shape_cast %13 : vector<8xf32> to vector<8x1xf32>
    %15 = vector.broadcast %14 : vector<8x1xf32> to vector<8x8xf32>
    %16 = arith.subf %12, %15 : vector<8x8xf32>
    %17 = math.exp %16 : vector<8x8xf32>
    %cst_4 = arith.constant dense<0.000000e+00> : vector<8xf32>
    %18 = vector.multi_reduction <add>, %17, %cst_4 [1] : vector<8x8xf32> to vector<8xf32>
    %19 = vector.shape_cast %18 : vector<8xf32> to vector<8x1xf32>
    %cst_5 = arith.constant dense<0.000000e+00> : vector<8x8xf32>
    %20 = tpu.matmul %17, %6, %cst_5 {dimension_numbers = #tpu.dot_dimension_numbers<[1], [0], [0], [1], [0, 0, 1, 1], [], []>} : vector<8x8xf32>, vector<8x8xf32>, vector<8x8xf32> -> vector<8x8xf32>
    %cst_6 = arith.constant 1.000000e+00 : f32
    %21 = vector.broadcast %cst_6 : f32 to vector<8x1xf32>
    %22 = arith.divf %21, %19 : vector<8x1xf32>
    %23 = vector.broadcast %22 : vector<8x1xf32> to vector<8x8xf32>
    %24 = arith.mulf %20, %23 : vector<8x8xf32>
    %25 = vector.extract_strided_slice %0 {offsets = [0, 8], sizes = [8, 8], strides = [1, 1]} : vector<8x96xf32> to vector<8x8xf32>
    %26 = vector.extract_strided_slice %0 {offsets = [0, 40], sizes = [8, 8], strides = [1, 1]} : vector<8x96xf32> to vector<8x8xf32>
    %27 = vector.extract_strided_slice %0 {offsets = [0, 72], sizes = [8, 8], strides = [1, 1]} : vector<8x96xf32> to vector<8x8xf32>
    %28 = tpu.transpose %26, [1, 0] : vector<8x8xf32> -> vector<8x8xf32>
    %cst_7 = arith.constant dense<0.000000e+00> : vector<8x8xf32>
    %29 = tpu.matmul %25, %28, %cst_7 {dimension_numbers = #tpu.dot_dimension_numbers<[1], [0], [0], [1], [0, 0, 1, 1], [], []>} : vector<8x8xf32>, vector<8x8xf32>, vector<8x8xf32> -> vector<8x8xf32>
    %cst_8 = arith.constant 0.353553385 : f32
    %30 = vector.broadcast %cst_8 : f32 to vector<8x8xf32>
    %31 = arith.mulf %29, %30 : vector<8x8xf32>
    %cst_9 = arith.constant 0xFF800000 : f32
    %32 = vector.broadcast %cst_9 : f32 to vector<8x8xf32>
    %33 = arith.select %3, %31, %32 : vector<8x8xi1>, vector<8x8xf32>
    %cst_10 = arith.constant dense<0xFF800000> : vector<8xf32>
    %34 = vector.multi_reduction <maximumf>, %33, %cst_10 [1] : vector<8x8xf32> to vector<8xf32>
    %35 = vector.shape_cast %34 : vector<8xf32> to vector<8x1xf32>
    %36 = vector.broadcast %35 : vector<8x1xf32> to vector<8x8xf32>
    %37 = arith.subf %33, %36 : vector<8x8xf32>
    %38 = math.exp %37 : vector<8x8xf32>
    %cst_11 = arith.constant dense<0.000000e+00> : vector<8xf32>
    %39 = vector.multi_reduction <add>, %38, %cst_11 [1] : vector<8x8xf32> to vector<8xf32>
    %40 = vector.shape_cast %39 : vector<8xf32> to vector<8x1xf32>
    %cst_12 = arith.constant dense<0.000000e+00> : vector<8x8xf32>
    %41 = tpu.matmul %38, %27, %cst_12 {dimension_numbers = #tpu.dot_dimension_numbers<[1], [0], [0], [1], [0, 0, 1, 1], [], []>} : vector<8x8xf32>, vector<8x8xf32>, vector<8x8xf32> -> vector<8x8xf32>
    %cst_13 = arith.constant 1.000000e+00 : f32
    %42 = vector.broadcast %cst_13 : f32 to vector<8x1xf32>
    %43 = arith.divf %42, %40 : vector<8x1xf32>
    %44 = vector.broadcast %43 : vector<8x1xf32> to vector<8x8xf32>
    %45 = arith.mulf %41, %44 : vector<8x8xf32>
    %46 = vector.extract_strided_slice %0 {offsets = [0, 16], sizes = [8, 8], strides = [1, 1]} : vector<8x96xf32> to vector<8x8xf32>
    %47 = vector.extract_strided_slice %0 {offsets = [0, 48], sizes = [8, 8], strides = [1, 1]} : vector<8x96xf32> to vector<8x8xf32>
    %48 = vector.extract_strided_slice %0 {offsets = [0, 80], sizes = [8, 8], strides = [1, 1]} : vector<8x96xf32> to vector<8x8xf32>
    %49 = tpu.transpose %47, [1, 0] : vector<8x8xf32> -> vector<8x8xf32>
    %cst_14 = arith.constant dense<0.000000e+00> : vector<8x8xf32>
    %50 = tpu.matmul %46, %49, %cst_14 {dimension_numbers = #tpu.dot_dimension_numbers<[1], [0], [0], [1], [0, 0, 1, 1], [], []>} : vector<8x8xf32>, vector<8x8xf32>, vector<8x8xf32> -> vector<8x8xf32>
    %cst_15 = arith.constant 0.353553385 : f32
    %51 = vector.broadcast %cst_15 : f32 to vector<8x8xf32>
    %52 = arith.mulf %50, %51 : vector<8x8xf32>
    %cst_16 = arith.constant 0xFF800000 : f32
    %53 = vector.broadcast %cst_16 : f32 to vector<8x8xf32>
    %54 = arith.select %3, %52, %53 : vector<8x8xi1>, vector<8x8xf32>
    %cst_17 = arith.constant dense<0xFF800000> : vector<8xf32>
    %55 = vector.multi_reduction <maximumf>, %54, %cst_17 [1] : vector<8x8xf32> to vector<8xf32>
    %56 = vector.shape_cast %55 : vector<8xf32> to vector<8x1xf32>
    %57 = vector.broadcast %56 : vector<8x1xf32> to vector<8x8xf32>
    %58 = arith.subf %54, %57 : vector<8x8xf32>
    %59 = math.exp %58 : vector<8x8xf32>
    %cst_18 = arith.constant dense<0.000000e+00> : vector<8xf32>
    %60 = vector.multi_reduction <add>, %59, %cst_18 [1] : vector<8x8xf32> to vector<8xf32>
    %61 = vector.shape_cast %60 : vector<8xf32> to vector<8x1xf32>
    %cst_19 = arith.constant dense<0.000000e+00> : vector<8x8xf32>
    %62 = tpu.matmul %59, %48, %cst_19 {dimension_numbers = #tpu.dot_dimension_numbers<[1], [0], [0], [1], [0, 0, 1, 1], [], []>} : vector<8x8xf32>, vector<8x8xf32>, vector<8x8xf32> -> vector<8x8xf32>
    %cst_20 = arith.constant 1.000000e+00 : f32
    %63 = vector.broadcast %cst_20 : f32 to vector<8x1xf32>
    %64 = arith.divf %63, %61 : vector<8x1xf32>
    %65 = vector.broadcast %64 : vector<8x1xf32> to vector<8x8xf32>
    %66 = arith.mulf %62, %65 : vector<8x8xf32>
    %67 = vector.extract_strided_slice %0 {offsets = [0, 24], sizes = [8, 8], strides = [1, 1]} : vector<8x96xf32> to vector<8x8xf32>
    %68 = vector.extract_strided_slice %0 {offsets = [0, 56], sizes = [8, 8], strides = [1, 1]} : vector<8x96xf32> to vector<8x8xf32>
    %69 = vector.extract_strided_slice %0 {offsets = [0, 88], sizes = [8, 8], strides = [1, 1]} : vector<8x96xf32> to vector<8x8xf32>
    %70 = tpu.transpose %68, [1, 0] : vector<8x8xf32> -> vector<8x8xf32>
    %cst_21 = arith.constant dense<0.000000e+00> : vector<8x8xf32>
    %71 = tpu.matmul %67, %70, %cst_21 {dimension_numbers = #tpu.dot_dimension_numbers<[1], [0], [0], [1], [0, 0, 1, 1], [], []>} : vector<8x8xf32>, vector<8x8xf32>, vector<8x8xf32> -> vector<8x8xf32>
    %cst_22 = arith.constant 0.353553385 : f32
    %72 = vector.broadcast %cst_22 : f32 to vector<8x8xf32>
    %73 = arith.mulf %71, %72 : vector<8x8xf32>
    %cst_23 = arith.constant 0xFF800000 : f32
    %74 = vector.broadcast %cst_23 : f32 to vector<8x8xf32>
    %75 = arith.select %3, %73, %74 : vector<8x8xi1>, vector<8x8xf32>
    %cst_24 = arith.constant dense<0xFF800000> : vector<8xf32>
    %76 = vector.multi_reduction <maximumf>, %75, %cst_24 [1] : vector<8x8xf32> to vector<8xf32>
    %77 = vector.shape_cast %76 : vector<8xf32> to vector<8x1xf32>
    %78 = vector.broadcast %77 : vector<8x1xf32> to vector<8x8xf32>
    %79 = arith.subf %75, %78 : vector<8x8xf32>
    %80 = math.exp %79 : vector<8x8xf32>
    %cst_25 = arith.constant dense<0.000000e+00> : vector<8xf32>
    %81 = vector.multi_reduction <add>, %80, %cst_25 [1] : vector<8x8xf32> to vector<8xf32>
    %82 = vector.shape_cast %81 : vector<8xf32> to vector<8x1xf32>
    %cst_26 = arith.constant dense<0.000000e+00> : vector<8x8xf32>
    %83 = tpu.matmul %80, %69, %cst_26 {dimension_numbers = #tpu.dot_dimension_numbers<[1], [0], [0], [1], [0, 0, 1, 1], [], []>} : vector<8x8xf32>, vector<8x8xf32>, vector<8x8xf32> -> vector<8x8xf32>
    %cst_27 = arith.constant 1.000000e+00 : f32
    %84 = vector.broadcast %cst_27 : f32 to vector<8x1xf32>
    %85 = arith.divf %84, %82 : vector<8x1xf32>
    %86 = vector.broadcast %85 : vector<8x1xf32> to vector<8x8xf32>
    %87 = arith.mulf %83, %86 : vector<8x8xf32>
    %88 = tpu.concatenate %24, %45, %66, %87 in 1 : vector<8x8xf32>, vector<8x8xf32>, vector<8x8xf32>, vector<8x8xf32> -> vector<8x32xf32>
    %c0_28 = arith.constant 0 : index
    %c0_29 = arith.constant 0 : index
    %89 = vector.load %arg2[%c0_28, %c0_29] : memref<8x32xf32, #tpu.memory_space<vmem>>, vector<8x32xf32>
    tpu.vector_store %arg2[%c0_28, %c0_29], %88 {strides = array<i32>} : memref<8x32xf32, #tpu.memory_space<vmem>>, vector<8x32xf32>,
    return
  }
  func.func @transform_0(%arg0: i32) -> (i32, i32) {
    %c0_i32 = arith.constant 0 : i32
    %c0_i32_0 = arith.constant 0 : i32
    return %arg0, %c0_i32 : i32, i32
  }
  func.func @transform_1(%arg0: i32) -> (i32, i32) {
    %c0_i32 = arith.constant 0 : i32
    %c0_i32_0 = arith.constant 0 : i32
    return %arg0, %c0_i32 : i32, i32
  }
}

module attributes {stable_mosaic.version = 11 : i64} {
  func.func @_ln_linear_kernel(%arg0: i32, %arg1: i32, %arg2: memref<16x32xf32, #tpu.memory_space<vmem>>, %arg3: memref<1x32xf32, #tpu.memory_space<vmem>>, %arg4: memref<1x32xf32, #tpu.memory_space<vmem>>, %arg5: memref<32x96xf32, #tpu.memory_space<vmem>>, %arg6: memref<1x96xf32, #tpu.memory_space<vmem>>, %arg7: memref<16x96xf32, #tpu.memory_space<vmem>>, %arg8: memref<16x32xf32, #tpu.memory_space<vmem>>) attributes {dimension_semantics = [#tpu.dimension_semantics<parallel>, #tpu.dimension_semantics<arbitrary>], iteration_bounds = array<i64: 1, 1>, scalar_prefetch = 0 : i64, scratch_operands = 1 : i64, tpu.core_type = #tpu.core_type<tc>, window_params = [{transform_indices = @transform_0, window_bounds = array<i64: 16, 32>}, {pipeline_mode = #tpu.pipeline_mode<synchronous>, transform_indices = @transform_1, window_bounds = array<i64: 1, 32>}, {pipeline_mode = #tpu.pipeline_mode<synchronous>, transform_indices = @transform_2, window_bounds = array<i64: 1, 32>}, {transform_indices = @transform_3, window_bounds = array<i64: 32, 96>}, {transform_indices = @transform_4, window_bounds = array<i64: 1, 96>}, {transform_indices = @transform_5, window_bounds = array<i64: 16, 96>}]} {
    %c0_i32 = arith.constant 0 : i32
    %0 = arith.cmpi eq, %arg1, %c0_i32 : i32
    %1 = arith.extui %0 : i1 to i32
    %c0_i32_0 = arith.constant 0 : i32
    %2 = arith.cmpi ne, %1, %c0_i32_0 : i32
    scf.if %2 {
      %c0_8 = arith.constant 0 : index
      %c0_9 = arith.constant 0 : index
      %10 = vector.load %arg2[%c0_8, %c0_9] : memref<16x32xf32, #tpu.memory_space<vmem>>, vector<16x32xf32>
      %cst_10 = arith.constant dense<0.000000e+00> : vector<16xf32>
      %11 = vector.multi_reduction <add>, %10, %cst_10 [1] : vector<16x32xf32> to vector<16xf32>
      %12 = vector.shape_cast %11 : vector<16xf32> to vector<16x1xf32>
      %cst_11 = arith.constant 3.200000e+01 : f32
      %13 = vector.broadcast %cst_11 : f32 to vector<16x1xf32>
      %14 = arith.divf %12, %13 : vector<16x1xf32>
      %15 = vector.broadcast %14 : vector<16x1xf32> to vector<16x32xf32>
      %16 = arith.subf %10, %15 : vector<16x32xf32>
      %17 = arith.mulf %16, %16 : vector<16x32xf32>
      %cst_12 = arith.constant dense<0.000000e+00> : vector<16xf32>
      %18 = vector.multi_reduction <add>, %17, %cst_12 [1] : vector<16x32xf32> to vector<16xf32>
      %19 = vector.shape_cast %18 : vector<16xf32> to vector<16x1xf32>
      %cst_13 = arith.constant 3.200000e+01 : f32
      %20 = vector.broadcast %cst_13 : f32 to vector<16x1xf32>
      %21 = arith.divf %19, %20 : vector<16x1xf32>
      %cst_14 = arith.constant 9.99999974E-6 : f32
      %22 = vector.broadcast %cst_14 : f32 to vector<16x1xf32>
      %23 = arith.addf %21, %22 : vector<16x1xf32>
      %24 = math.rsqrt %23 : vector<16x1xf32>
      %25 = vector.broadcast %24 : vector<16x1xf32> to vector<16x32xf32>
      %26 = arith.mulf %16, %25 : vector<16x32xf32>
      %c0_15 = arith.constant 0 : index
      %c0_16 = arith.constant 0 : index
      %27 = vector.load %arg3[%c0_15, %c0_16] : memref<1x32xf32, #tpu.memory_space<vmem>>, vector<1x32xf32>
      %28 = vector.broadcast %27 : vector<1x32xf32> to vector<16x32xf32>
      %29 = arith.mulf %26, %28 : vector<16x32xf32>
      %c0_17 = arith.constant 0 : index
      %c0_18 = arith.constant 0 : index
      %30 = vector.load %arg4[%c0_17, %c0_18] : memref<1x32xf32, #tpu.memory_space<vmem>>, vector<1x32xf32>
      %31 = vector.broadcast %30 : vector<1x32xf32> to vector<16x32xf32>
      %32 = arith.addf %29, %31 : vector<16x32xf32>
      %c0_19 = arith.constant 0 : index
      %c0_20 = arith.constant 0 : index
      %33 = vector.load %arg8[%c0_19, %c0_20] : memref<16x32xf32, #tpu.memory_space<vmem>>, vector<16x32xf32>
      tpu.vector_store %arg8[%c0_19, %c0_20], %32 {strides = array<i32>} : memref<16x32xf32, #tpu.memory_space<vmem>>, vector<16x32xf32>,
    } else {
    }
    %c0 = arith.constant 0 : index
    %c0_1 = arith.constant 0 : index
    %3 = vector.load %arg8[%c0, %c0_1] : memref<16x32xf32, #tpu.memory_space<vmem>>, vector<16x32xf32>
    %c0_2 = arith.constant 0 : index
    %c0_3 = arith.constant 0 : index
    %4 = vector.load %arg5[%c0_2, %c0_3] : memref<32x96xf32, #tpu.memory_space<vmem>>, vector<32x96xf32>
    %cst = arith.constant dense<0.000000e+00> : vector<16x96xf32>
    %5 = tpu.matmul %3, %4, %cst {dimension_numbers = #tpu.dot_dimension_numbers<[1], [0], [0], [1], [0, 0, 1, 1], [], []>} : vector<16x32xf32>, vector<32x96xf32>, vector<16x96xf32> -> vector<16x96xf32>
    %c0_4 = arith.constant 0 : index
    %c0_5 = arith.constant 0 : index
    %6 = vector.load %arg6[%c0_4, %c0_5] : memref<1x96xf32, #tpu.memory_space<vmem>>, vector<1x96xf32>
    %7 = vector.broadcast %6 : vector<1x96xf32> to vector<16x96xf32>
    %8 = arith.addf %5, %7 : vector<16x96xf32>
    %c0_6 = arith.constant 0 : index
    %c0_7 = arith.constant 0 : index
    %9 = vector.load %arg7[%c0_6, %c0_7] : memref<16x96xf32, #tpu.memory_space<vmem>>, vector<16x96xf32>
    tpu.vector_store %arg7[%c0_6, %c0_7], %8 {strides = array<i32>} : memref<16x96xf32, #tpu.memory_space<vmem>>, vector<16x96xf32>,
    return
  }
  func.func @transform_0(%arg0: i32, %arg1: i32) -> (i32, i32) {
    %c0_i32 = arith.constant 0 : i32
    %c0_i32_0 = arith.constant 0 : i32
    return %arg0, %c0_i32 : i32, i32
  }
  func.func @transform_1(%arg0: i32, %arg1: i32) -> (i32, i32) {
    %c0_i32 = arith.constant 0 : i32
    %c0_i32_0 = arith.constant 0 : i32
    %c0_i32_1 = arith.constant 0 : i32
    return %c0_i32, %c0_i32_0 : i32, i32
  }
  func.func @transform_2(%arg0: i32, %arg1: i32) -> (i32, i32) {
    %c0_i32 = arith.constant 0 : i32
    %c0_i32_0 = arith.constant 0 : i32
    %c0_i32_1 = arith.constant 0 : i32
    return %c0_i32, %c0_i32_0 : i32, i32
  }
  func.func @transform_3(%arg0: i32, %arg1: i32) -> (i32, i32) {
    %c0_i32 = arith.constant 0 : i32
    %c0_i32_0 = arith.constant 0 : i32
    return %c0_i32, %arg1 : i32, i32
  }
  func.func @transform_4(%arg0: i32, %arg1: i32) -> (i32, i32) {
    %c0_i32 = arith.constant 0 : i32
    %c0_i32_0 = arith.constant 0 : i32
    return %c0_i32, %arg1 : i32, i32
  }
  func.func @transform_5(%arg0: i32, %arg1: i32) -> (i32, i32) {
    %c0_i32 = arith.constant 0 : i32
    return %arg0, %arg1 : i32, i32
  }
}

module attributes {stable_mosaic.version = 11 : i64} {
  func.func @_ln_mlp_kernel(%arg0: i32, %arg1: i32, %arg2: memref<16x32xf32, #tpu.memory_space<vmem>>, %arg3: memref<1x32xf32, #tpu.memory_space<vmem>>, %arg4: memref<1x32xf32, #tpu.memory_space<vmem>>, %arg5: memref<32x128xf32, #tpu.memory_space<vmem>>, %arg6: memref<1x128xf32, #tpu.memory_space<vmem>>, %arg7: memref<128x32xf32, #tpu.memory_space<vmem>>, %arg8: memref<1x32xf32, #tpu.memory_space<vmem>>, %arg9: memref<16x32xf32, #tpu.memory_space<vmem>>, %arg10: memref<16x32xf32, #tpu.memory_space<vmem>>, %arg11: memref<16x32xf32, #tpu.memory_space<vmem>>) attributes {dimension_semantics = [#tpu.dimension_semantics<parallel>, #tpu.dimension_semantics<arbitrary>], iteration_bounds = array<i64: 1, 1>, scalar_prefetch = 0 : i64, scratch_operands = 2 : i64, tpu.core_type = #tpu.core_type<tc>, window_params = [{transform_indices = @transform_0, window_bounds = array<i64: 16, 32>}, {pipeline_mode = #tpu.pipeline_mode<synchronous>, transform_indices = @transform_1, window_bounds = array<i64: 1, 32>}, {pipeline_mode = #tpu.pipeline_mode<synchronous>, transform_indices = @transform_2, window_bounds = array<i64: 1, 32>}, {transform_indices = @transform_3, window_bounds = array<i64: 32, 128>}, {transform_indices = @transform_4, window_bounds = array<i64: 1, 128>}, {transform_indices = @transform_5, window_bounds = array<i64: 128, 32>}, {pipeline_mode = #tpu.pipeline_mode<synchronous>, transform_indices = @transform_6, window_bounds = array<i64: 1, 32>}, {transform_indices = @transform_7, window_bounds = array<i64: 16, 32>}]} {
    %c0_i32 = arith.constant 0 : i32
    %0 = arith.cmpi eq, %arg1, %c0_i32 : i32
    %1 = arith.extui %0 : i1 to i32
    %c0_i32_0 = arith.constant 0 : i32
    %2 = arith.cmpi ne, %1, %c0_i32_0 : i32
    scf.if %2 {
      %c0_18 = arith.constant 0 : index
      %c0_19 = arith.constant 0 : index
      %25 = vector.load %arg2[%c0_18, %c0_19] : memref<16x32xf32, #tpu.memory_space<vmem>>, vector<16x32xf32>
      %cst_20 = arith.constant dense<0.000000e+00> : vector<16xf32>
      %26 = vector.multi_reduction <add>, %25, %cst_20 [1] : vector<16x32xf32> to vector<16xf32>
      %27 = vector.shape_cast %26 : vector<16xf32> to vector<16x1xf32>
      %cst_21 = arith.constant 3.200000e+01 : f32
      %28 = vector.broadcast %cst_21 : f32 to vector<16x1xf32>
      %29 = arith.divf %27, %28 : vector<16x1xf32>
      %30 = vector.broadcast %29 : vector<16x1xf32> to vector<16x32xf32>
      %31 = arith.subf %25, %30 : vector<16x32xf32>
      %32 = arith.mulf %31, %31 : vector<16x32xf32>
      %cst_22 = arith.constant dense<0.000000e+00> : vector<16xf32>
      %33 = vector.multi_reduction <add>, %32, %cst_22 [1] : vector<16x32xf32> to vector<16xf32>
      %34 = vector.shape_cast %33 : vector<16xf32> to vector<16x1xf32>
      %cst_23 = arith.constant 3.200000e+01 : f32
      %35 = vector.broadcast %cst_23 : f32 to vector<16x1xf32>
      %36 = arith.divf %34, %35 : vector<16x1xf32>
      %cst_24 = arith.constant 9.99999974E-6 : f32
      %37 = vector.broadcast %cst_24 : f32 to vector<16x1xf32>
      %38 = arith.addf %36, %37 : vector<16x1xf32>
      %39 = math.rsqrt %38 : vector<16x1xf32>
      %40 = vector.broadcast %39 : vector<16x1xf32> to vector<16x32xf32>
      %41 = arith.mulf %31, %40 : vector<16x32xf32>
      %c0_25 = arith.constant 0 : index
      %c0_26 = arith.constant 0 : index
      %42 = vector.load %arg3[%c0_25, %c0_26] : memref<1x32xf32, #tpu.memory_space<vmem>>, vector<1x32xf32>
      %43 = vector.broadcast %42 : vector<1x32xf32> to vector<16x32xf32>
      %44 = arith.mulf %41, %43 : vector<16x32xf32>
      %c0_27 = arith.constant 0 : index
      %c0_28 = arith.constant 0 : index
      %45 = vector.load %arg4[%c0_27, %c0_28] : memref<1x32xf32, #tpu.memory_space<vmem>>, vector<1x32xf32>
      %46 = vector.broadcast %45 : vector<1x32xf32> to vector<16x32xf32>
      %47 = arith.addf %44, %46 : vector<16x32xf32>
      %c0_29 = arith.constant 0 : index
      %c0_30 = arith.constant 0 : index
      %48 = vector.load %arg10[%c0_29, %c0_30] : memref<16x32xf32, #tpu.memory_space<vmem>>, vector<16x32xf32>
      tpu.vector_store %arg10[%c0_29, %c0_30], %47 {strides = array<i32>} : memref<16x32xf32, #tpu.memory_space<vmem>>, vector<16x32xf32>,
      %cst_31 = arith.constant 0.000000e+00 : f32
      %49 = vector.broadcast %cst_31 : f32 to vector<16x32xf32>
      %c0_32 = arith.constant 0 : index
      %c0_33 = arith.constant 0 : index
      %50 = vector.load %arg11[%c0_32, %c0_33] : memref<16x32xf32, #tpu.memory_space<vmem>>, vector<16x32xf32>
      tpu.vector_store %arg11[%c0_32, %c0_33], %49 {strides = array<i32>} : memref<16x32xf32, #tpu.memory_space<vmem>>, vector<16x32xf32>,
    } else {
    }
    %c0 = arith.constant 0 : index
    %c0_1 = arith.constant 0 : index
    %3 = vector.load %arg10[%c0, %c0_1] : memref<16x32xf32, #tpu.memory_space<vmem>>, vector<16x32xf32>
    %c0_2 = arith.constant 0 : index
    %c0_3 = arith.constant 0 : index
    %4 = vector.load %arg5[%c0_2, %c0_3] : memref<32x128xf32, #tpu.memory_space<vmem>>, vector<32x128xf32>
    %cst = arith.constant dense<0.000000e+00> : vector<16x128xf32>
    %5 = tpu.matmul %3, %4, %cst {dimension_numbers = #tpu.dot_dimension_numbers<[1], [0], [0], [1], [0, 0, 1, 1], [], []>} : vector<16x32xf32>, vector<32x128xf32>, vector<16x128xf32> -> vector<16x128xf32>
    %c0_4 = arith.constant 0 : index
    %c0_5 = arith.constant 0 : index
    %6 = vector.load %arg6[%c0_4, %c0_5] : memref<1x128xf32, #tpu.memory_space<vmem>>, vector<1x128xf32>
    %7 = vector.broadcast %6 : vector<1x128xf32> to vector<16x128xf32>
    %8 = arith.addf %5, %7 : vector<16x128xf32>
    %cst_6 = arith.constant 5.000000e-01 : f32
    %9 = vector.broadcast %cst_6 : f32 to vector<16x128xf32>
    %10 = arith.mulf %9, %8 : vector<16x128xf32>
    %cst_7 = arith.constant 0.707106769 : f32
    %11 = vector.broadcast %cst_7 : f32 to vector<16x128xf32>
    %12 = arith.mulf %8, %11 : vector<16x128xf32>
    %13 = math.erf %12 : vector<16x128xf32>
    %cst_8 = arith.constant 1.000000e+00 : f32
    %14 = vector.broadcast %cst_8 : f32 to vector<16x128xf32>
    %15 = arith.addf %14, %13 : vector<16x128xf32>
    %16 = arith.mulf %10, %15 : vector<16x128xf32>
    %c0_9 = arith.constant 0 : index
    %c0_10 = arith.constant 0 : index
    %17 = vector.load %arg11[%c0_9, %c0_10] : memref<16x32xf32, #tpu.memory_space<vmem>>, vector<16x32xf32>
    %c0_11 = arith.constant 0 : index
    %c0_12 = arith.constant 0 : index
    %18 = vector.load %arg7[%c0_11, %c0_12] : memref<128x32xf32, #tpu.memory_space<vmem>>, vector<128x32xf32>
    %cst_13 = arith.constant dense<0.000000e+00> : vector<16x32xf32>
    %19 = tpu.matmul %16, %18, %cst_13 {dimension_numbers = #tpu.dot_dimension_numbers<[1], [0], [0], [1], [0, 0, 1, 1], [], []>} : vector<16x128xf32>, vector<128x32xf32>, vector<16x32xf32> -> vector<16x32xf32>
    %20 = arith.addf %17, %19 : vector<16x32xf32>
    %c0_14 = arith.constant 0 : index
    %c0_15 = arith.constant 0 : index
    %21 = vector.load %arg11[%c0_14, %c0_15] : memref<16x32xf32, #tpu.memory_space<vmem>>, vector<16x32xf32>
    tpu.vector_store %arg11[%c0_14, %c0_15], %20 {strides = array<i32>} : memref<16x32xf32, #tpu.memory_space<vmem>>, vector<16x32xf32>,
    %c0_i32_16 = arith.constant 0 : i32
    %22 = arith.cmpi eq, %arg1, %c0_i32_16 : i32
    %23 = arith.extui %22 : i1 to i32
    %c0_i32_17 = arith.constant 0 : i32
    %24 = arith.cmpi ne, %23, %c0_i32_17 : i32
    scf.if %24 {
      %c0_18 = arith.constant 0 : index
      %c0_19 = arith.constant 0 : index
      %25 = vector.load %arg11[%c0_18, %c0_19] : memref<16x32xf32, #tpu.memory_space<vmem>>, vector<16x32xf32>
      %c0_20 = arith.constant 0 : index
      %c0_21 = arith.constant 0 : index
      %26 = vector.load %arg8[%c0_20, %c0_21] : memref<1x32xf32, #tpu.memory_space<vmem>>, vector<1x32xf32>
      %27 = vector.broadcast %26 : vector<1x32xf32> to vector<16x32xf32>
      %28 = arith.addf %25, %27 : vector<16x32xf32>
      %c0_22 = arith.constant 0 : index
      %c0_23 = arith.constant 0 : index
      %29 = vector.load %arg2[%c0_22, %c0_23] : memref<16x32xf32, #tpu.memory_space<vmem>>, vector<16x32xf32>
      %30 = arith.addf %28, %29 : vector<16x32xf32>
      %c0_24 = arith.constant 0 : index
      %c0_25 = arith.constant 0 : index
      %31 = vector.load %arg9[%c0_24, %c0_25] : memref<16x32xf32, #tpu.memory_space<vmem>>, vector<16x32xf32>
      tpu.vector_store %arg9[%c0_24, %c0_25], %30 {strides = array<i32>} : memref<16x32xf32, #tpu.memory_space<vmem>>, vector<16x32xf32>,
    } else {
    }
    return
  }
  func.func @transform_0(%arg0: i32, %arg1: i32) -> (i32, i32) {
    %c0_i32 = arith.constant 0 : i32
    %c0_i32_0 = arith.constant 0 : i32
    return %arg0, %c0_i32 : i32, i32
  }
  func.func @transform_1(%arg0: i32, %arg1: i32) -> (i32, i32) {
    %c0_i32 = arith.constant 0 : i32
    %c0_i32_0 = arith.constant 0 : i32
    %c0_i32_1 = arith.constant 0 : i32
    return %c0_i32, %c0_i32_0 : i32, i32
  }
  func.func @transform_2(%arg0: i32, %arg1: i32) -> (i32, i32) {
    %c0_i32 = arith.constant 0 : i32
    %c0_i32_0 = arith.constant 0 : i32
    %c0_i32_1 = arith.constant 0 : i32
    return %c0_i32, %c0_i32_0 : i32, i32
  }
  func.func @transform_3(%arg0: i32, %arg1: i32) -> (i32, i32) {
    %c0_i32 = arith.constant 0 : i32
    %c0_i32_0 = arith.constant 0 : i32
    return %c0_i32, %arg1 : i32, i32
  }
  func.func @transform_4(%arg0: i32, %arg1: i32) -> (i32, i32) {
    %c0_i32 = arith.constant 0 : i32
    %c0_i32_0 = arith.constant 0 : i32
    return %c0_i32, %arg1 : i32, i32
  }
  func.func @transform_5(%arg0: i32, %arg1: i32) -> (i32, i32) {
    %c0_i32 = arith.constant 0 : i32
    %c0_i32_0 = arith.constant 0 : i32
    return %arg1, %c0_i32 : i32, i32
  }
  func.func @transform_6(%arg0: i32, %arg1: i32) -> (i32, i32) {
    %c0_i32 = arith.constant 0 : i32
    %c0_i32_0 = arith.constant 0 : i32
    %c0_i32_1 = arith.constant 0 : i32
    return %c0_i32, %c0_i32_0 : i32, i32
  }
  func.func @transform_7(%arg0: i32, %arg1: i32) -> (i32, i32) {
    %c0_i32 = arith.constant 0 : i32
    %c0_i32_0 = arith.constant 0 : i32
    return %arg0, %c0_i32 : i32, i32
  }
}

</mosaic_0001>

<llo_original>
// kernel: transformer_block_forward.4
$region0: #{transformer_block_forward.4}
  #allocation0 [shape = 'u32[]', space=smem, size = 0x4, offset = 0x4, fixed_abs, tag = 'smem constant byte address 0x4 - core index']
  #allocation1 [shape = 'u32[144,128]{1,0:T(1,128)}', space=vmem, size = 0x12000, scoped, tag = 'internal scratch']
  #allocation2 [shape = 'f32[16,32]{1,0:T(8,128)}', space=vmem, size = 0x2000, scoped, tag = 'scratch operand']
  %s0 = inlined_call_operand.hbm [shape: f32[16,32], index: 0, kind: input, shape index: {}]
  %s1 = inlined_call_operand.hbm [shape: f32[1,32], index: 1, kind: input, shape index: {}]
  %s2 = inlined_call_operand.hbm [shape: f32[1,32], index: 2, kind: input, shape index: {}]
  %s3 = inlined_call_operand.hbm [shape: f32[32,96], index: 3, kind: input, shape index: {}]
  %s4 = inlined_call_operand.hbm [shape: f32[1,96], index: 4, kind: input, shape index: {}]
  %s5 = inlined_call_operand.hbm [shape: f32[16,96], index: 5, kind: output, shape index: {}]
  %s6 = sld [smem:[#allocation0]]
  $region54: #{transformer_block_forward.4} parent=0
    _
  %s8 = ssub.s32 1, %s6
  %s9 = scalar_select 0, %s8, %s6
  $region1: #{transformer_block_forward.4} parent=0
    #allocation3 [shape = 'u8[8192]{0}', space=vmem, size = 0x2000, scoped, tag = 'input window, operand 0, single buffered']
    #allocation4 [shape = 's32[1]{0}', space=sflag, size = 0x4, scoped, tag = 'scoped memory for transformer_block_forward.4']
    #allocation5 [shape = 's32[1]{0}', space=sflag, size = 0x4, scoped, tag = 'scoped memory for transformer_block_forward.4']
    #allocation6 [shape = 'u8[512]{0}', space=vmem, size = 0x400, scoped, tag = 'input window, operand 1, single buffered']
    #allocation7 [shape = 's32[1]{0}', space=sflag, size = 0x4, scoped, tag = 'scoped memory for transformer_block_forward.4']
    #allocation8 [shape = 'u8[512]{0}', space=vmem, size = 0x400, scoped, tag = 'input window, operand 2, single buffered']
    #allocation9 [shape = 'u8[16384]{0}', space=vmem, size = 0x4000, scoped, tag = 'input window, operand 3, single buffered']
    #allocation10 [shape = 's32[1]{0}', space=sflag, size = 0x4, scoped, tag = 'scoped memory for transformer_block_forward.4']
    #allocation11 [shape = 'u8[512]{0}', space=vmem, size = 0x400, scoped, tag = 'input window, operand 4, single buffered']
    #allocation12 [shape = 'u8[8192]{0}', space=vmem, size = 0x2000, scoped, tag = 'output window, operand 0, single buffered']
    %10 = vsyncpa [#allocation4], 0
    %11 = vsyncpa [#allocation7], 0
    %12 = vsyncpa [#allocation10], 0
    %13 = vsyncpa [#allocation5], 0
    // Predicated region
    $region2: #{transformer_block_forward.4} parent=1 // pred_check
      _
    $region3: #{transformer_block_forward.4} parent=1 // pred_check_branch
      %15 = sbr.rel (0) target = $region5
    $region4: #{transformer_block_forward.4} parent=1 // pred_region
      %s17 = ssub.s32 256, 256
      %18 = vsyncadd [#allocation4], %s17
      %s19 = sshll.u32 [#allocation3], 4
      %s20 = int_to_ptr.vmem [resolvable:$true] %s19
      %25 = dma.hbm_to_vmem [thread:$0]  %s0, 256, %s20, [#allocation4], 128, 128, 8
    $region5: #{transformer_block_forward.4} parent=1 // pred_fallthru
      _
    // Predicated region
    $region6: #{transformer_block_forward.4} parent=1 // pred_check
      _
    $region7: #{transformer_block_forward.4} parent=1 // pred_check_branch
      %27 = sbr.rel (0) target = $region9
    $region8: #{transformer_block_forward.4} parent=1 // pred_region
      %s29 = ssub.s32 16, 16
      %30 = vsyncadd [#allocation7], %s29
      %s32 = sshll.u32 [#allocation6], 4
      %s33 = int_to_ptr.vmem [resolvable:$true] %s32
      %35 = dma.hbm_to_vmem [thread:$0]  %s1, 16, %s33, [#allocation7]
    $region9: #{transformer_block_forward.4} parent=1 // pred_fallthru
      _
    // Predicated region
    $region10: #{transformer_block_forward.4} parent=1 // pred_check
      _
    $region11: #{transformer_block_forward.4} parent=1 // pred_check_branch
      %37 = sbr.rel (0) target = $region13
    $region12: #{transformer_block_forward.4} parent=1 // pred_region
      %s39 = ssub.s32 16, 16
      %40 = vsyncadd [#allocation7], %s39
      %s42 = sshll.u32 [#allocation8], 4
      %s43 = int_to_ptr.vmem [resolvable:$true] %s42
      %45 = dma.hbm_to_vmem [thread:$0]  %s2, 16, %s43, [#allocation7]
    $region13: #{transformer_block_forward.4} parent=1 // pred_fallthru
      _
    // Predicated region
    $region14: #{transformer_block_forward.4} parent=1 // pred_check
      _
    $region15: #{transformer_block_forward.4} parent=1 // pred_check_branch
      %47 = sbr.rel (0) target = $region17
    $region16: #{transformer_block_forward.4} parent=1 // pred_region
      %s49 = ssub.s32 512, 512
      %50 = vsyncadd [#allocation10], %s49
      %s51 = sshll.u32 [#allocation9], 4
      %s52 = int_to_ptr.vmem [resolvable:$true] %s51
      %57 = dma.hbm_to_vmem [thread:$0]  %s3, 512, %s52, [#allocation10], 128, 128, 8
    $region17: #{transformer_block_forward.4} parent=1 // pred_fallthru
      _
    // Predicated region
    $region18: #{transformer_block_forward.4} parent=1 // pred_check
      _
    $region19: #{transformer_block_forward.4} parent=1 // pred_check_branch
      %59 = sbr.rel (0) target = $region21
    $region20: #{transformer_block_forward.4} parent=1 // pred_region
      %s61 = ssub.s32 16, 16
      %62 = vsyncadd [#allocation10], %s61
      %s64 = sshll.u32 [#allocation11], 4
      %s65 = int_to_ptr.vmem [resolvable:$true] %s64
      %67 = dma.hbm_to_vmem [thread:$0]  %s4, 16, %s65, [#allocation10]
    $region21: #{transformer_block_forward.4} parent=1 // pred_fallthru
      _
    // Predicated region
    $region22: #{transformer_block_forward.4} parent=1 // pred_check
      _
    $region23: #{transformer_block_forward.4} parent=1 // pred_check_branch
      %69 = sbr.rel (0) target = $region25
    $region24: #{transformer_block_forward.4} parent=1 // pred_region
      %70 = dma.done [#allocation4], 256
    $region25: #{transformer_block_forward.4} parent=1 // pred_fallthru
      _
    // Predicated region
    $region26: #{transformer_block_forward.4} parent=1 // pred_check
      _
    $region27: #{transformer_block_forward.4} parent=1 // pred_check_branch
      %72 = sbr.rel (0) target = $region29
    $region28: #{transformer_block_forward.4} parent=1 // pred_region
      %73 = dma.done [#allocation7], 16
    $region29: #{transformer_block_forward.4} parent=1 // pred_fallthru
      _
    // Predicated region
    $region30: #{transformer_block_forward.4} parent=1 // pred_check
      _
    $region31: #{transformer_block_forward.4} parent=1 // pred_check_branch
      %75 = sbr.rel (0) target = $region33
    $region32: #{transformer_block_forward.4} parent=1 // pred_region
      %76 = dma.done [#allocation7], 16
    $region33: #{transformer_block_forward.4} parent=1 // pred_fallthru
      _
    // Predicated region
    $region34: #{transformer_block_forward.4} parent=1 // pred_check
      _
    $region35: #{transformer_block_forward.4} parent=1 // pred_check_branch
      %78 = sbr.rel (0) target = $region37
    $region36: #{transformer_block_forward.4} parent=1 // pred_region
      %79 = dma.done [#allocation10], 512
    $region37: #{transformer_block_forward.4} parent=1 // pred_fallthru
      _
    // Predicated region
    $region38: #{transformer_block_forward.4} parent=1 // pred_check
      _
    $region39: #{transformer_block_forward.4} parent=1 // pred_check_branch
      %81 = sbr.rel (0) target = $region41
    $region40: #{transformer_block_forward.4} parent=1 // pred_region
      %82 = dma.done [#allocation10], 16
    $region41: #{transformer_block_forward.4} parent=1 // pred_fallthru
      _
    %p83 = scmp.eq.s32.totalorder 0, 0
    // Predicated region
    $region42: #{transformer_block_forward.4} parent=1 // pred_check
      %p84 = pneg %p83
    $region43: #{transformer_block_forward.4} parent=1 // pred_check_branch
      %86 = sbr.rel (%p84) target = $region45
    $region44: #{transformer_block_forward.4} parent=1 // pred_region
      %v87 = vld [vmem:[#allocation3] sm:$0xff]
      %v88 = vld [vmem:[#allocation3 + $0x8] sm:$0xff]
      %vm89 = vcmask 261120
      %v90 = vsel %vm89, %v87, 0.0
      %91 = vadd.xlane.f32.xlu0 %v90
      %v92 = vpop.xlane.xlu0 %91
      %v93 = vsel %vm89, %v88, 0.0
      %94 = vadd.xlane.f32.xlu0 %v93
      %v95 = vpop.xlane.xlu0 %94
      %v96 = vrcp.pop 32.0
      %v97 = vmul.f32 %v92, %v96
      %v98 = vmul.f32 %v95, %v96
      %v99 = vsub.f32 %v87, %v97
      %v100 = vsub.f32 %v88, %v98
      %v101 = vmul.f32 %v99, %v99
      %v102 = vmul.f32 %v100, %v100
      %v103 = vsel %vm89, %v101, 0.0
      %104 = vadd.xlane.f32.xlu0 %v103
      %v105 = vpop.xlane.xlu0 %104
      %v106 = vsel %vm89, %v102, 0.0
      %107 = vadd.xlane.f32.xlu0 %v106
      %v108 = vpop.xlane.xlu0 %107
      %v109 = vmul.f32 %v105, %v96
      %v110 = vmul.f32 %v108, %v96
      %v111 = vadd.f32 %v109, 1e-05
      %v112 = vadd.f32 %v110, 1e-05
      %v113 = vrsqrt.pop %v111
      %v114 = vrsqrt.pop %v112
      %v115 = vmul.f32 %v99, %v113
      %v116 = vmul.f32 %v100, %v114
      %v117 = vld [vmem:[#allocation6] sm:$0x1]
      %v119 = vlaneseq
      %v120 = vshrl.u32 %v119, 7
      %v121 = vsub.s32 0, %v120
      %v122 = vrot.slane %v117, %v121
      %v124 = vmul.f32 %v115, %v122
      %v125 = vmul.f32 %v116, %v122
      %v126 = vld [vmem:[#allocation8] sm:$0x1]
      %v128 = vlaneseq
      %v129 = vshrl.u32 %v128, 7
      %v130 = vsub.s32 0, %v129
      %v131 = vrot.slane %v126, %v130
      %v133 = vadd.f32 %v124, %v131
      %v134 = vadd.f32 %v125, %v131
      %135 = vst.msk [vmem:[#allocation2] sm:$0xff] %vm89, %v133
      %136 = vst.msk [vmem:[#allocation2 + $0x8] sm:$0xff] %vm89, %v134
    $region45: #{transformer_block_forward.4} parent=1 // pred_fallthru
      _
    %v137 = vld [vmem:[#allocation2] sm:$0xff]
    %v138 = vld [vmem:[#allocation2 + $0x8] sm:$0xff]
    %v139 = vld [vmem:[#allocation9] sm:$0xff]
    %v140 = vld [vmem:[#allocation9 + $0x8] sm:$0xff]
    %v141 = vld [vmem:[#allocation9 + $0x10] sm:$0xff]
    %v142 = vld [vmem:[#allocation9 + $0x18] sm:$0xff]
    %v143 = vld [vmem:[#allocation11] sm:$0x1]
    %v145 = vlaneseq
    %v146 = vshrl.u32 %v145, 7
    %v147 = vsub.s32 0, %v146
    %v148 = vrot.slane %v143, %v147
    %vm150 = vcmask 261120
    %v152 = vsel %vm150, %v137, 0
    %v155 = vsel %vm150, %v138, 0
    %157 = vmatprep.subr.mxu0 0.0
    %158 = vmatpush1.msra.mxu0 %v139
    %159 = vmatprep.subr.mxu0 0.0
    %160 = vmatpush1.msra.mxu0 %v140
    %161 = vmatprep.subr.mxu0 0.0
    %162 = vmatpush1.msra.mxu0 %v141
    %163 = vmatprep.subr.mxu0 0.0
    %164 = vmatpush1.msra.mxu0 %v142
    %165 = vmatprep.subr.mxu0 0.0
    %166 = vmatpush1.msra.mxu0 0.0
    %167 = vmatprep.subr.mxu0 0.0
    %168 = vmatpush1.msra.mxu0 0.0
    %169 = vmatprep.subr.mxu0 0.0
    %170 = vmatpush1.msra.mxu0 0.0
    %171 = vmatprep.subr.mxu0 0.0
    %172 = vmatpush1.msra.mxu0 0.0
    %173 = vmatprep.subr.mxu0 0.0
    %174 = vmatpush1.msra.mxu0 0.0
    %175 = vmatprep.subr.mxu0 0.0
    %176 = vmatpush1.msra.mxu0 0.0
    %177 = vmatprep.subr.mxu0 0.0
    %178 = vmatpush1.msra.mxu0 0.0
    %179 = vmatprep.subr.mxu0 0.0
    %180 = vmatpush1.msra.mxu0 0.0
    %181 = vmatprep.subr.mxu0 0.0
    %182 = vmatpush1.msra.mxu0 0.0
    %183 = vmatprep.subr.mxu0 0.0
    %184 = vmatpush1.msra.mxu0 0.0
    %185 = vmatprep.subr.mxu0 0.0
    %186 = vmatpush1.msra.mxu0 0.0
    %187 = vmatprep.subr.mxu0 0.0
    %188 = vmatpush1.msra.mxu0 0.0
    %189 = vmatprep.subr.mxu0 0.0
    %190 = vmatpush1.msra.mxu0 0.0
    %191 = vmatprep.subr.mxu0 0.0
    %192 = vmatpush1.msra.mxu0 0.0
    %193 = vmatprep.subr.mxu0 0.0
    %194 = vmatpush1.msra.mxu0 0.0
    %195 = vmatprep.subr.mxu0 0.0
    %196 = vmatpush1.msra.mxu0 0.0
    %197 = vmatprep.subr.mxu0 0.0
    %198 = vmatpush1.msra.mxu0 0.0
    %199 = vmatprep.subr.mxu0 0.0
    %200 = vmatpush1.msra.mxu0 0.0
    %201 = vmatprep.subr.mxu0 0.0
    %202 = vmatpush1.msra.mxu0 0.0
    %203 = vmatprep.subr.mxu0 0.0
    %204 = vmatpush1.msra.mxu0 0.0
    %205 = vmatprep.subr.mxu0 0.0
    %206 = vmatpush1.msra.mxu0 0.0
    %207 = vmatprep.subr.mxu0 0.0
    %208 = vmatpush1.msra.mxu0 0.0
    %209 = vmatprep.subr.mxu0 0.0
    %210 = vmatpush1.msra.mxu0 0.0
    %211 = vmatprep.subr.mxu0 0.0
    %212 = vmatpush1.msra.mxu0 0.0
    %213 = vmatprep.subr.mxu0 0.0
    %214 = vmatpush1.msra.mxu0 0.0
    %215 = vmatprep.subr.mxu0 0.0
    %216 = vmatpush1.msra.mxu0 0.0
    %217 = vmatprep.subr.mxu0 0.0
    %218 = vmatpush1.msra.mxu0 0.0
    %219 = vmatprep.subr.mxu0 0.0
    %220 = vmatpush1.msra.mxu0 0.0
    %221 = vmatprep.mubr.f32.mxu0 0.0
    %222 = vmatmul.mubr.f32.gmra.mrb[0].mxu0 %v152
    %v223 = vpop.f32.mrb[0].mxu0
    %v224 = vadd.f32 %v148, %v223
    %v225 = vpop.f32.mrb[0].mxu0
    %226 = vmatprep.mubr.f32.mxu0 0.0
    %227 = vmatmul.mubr.f32.gmra.mrb[0].mxu0 %v155
    %v228 = vpop.f32.mrb[0].mxu0
    %v229 = vadd.f32 %v148, %v228
    %v230 = vpop.f32.mrb[0].mxu0
    %231 = vdwg.mxu0
    %vm232 = vcmask 785408
    %233 = vst.msk [vmem:[#allocation12] sm:$0xff] %vm232, %v224
    %234 = vst.msk [vmem:[#allocation12 + $0x8] sm:$0xff] %vm232, %v229
    // Predicated region
    $region46: #{transformer_block_forward.4} parent=1 // pred_check
      _
    $region47: #{transformer_block_forward.4} parent=1 // pred_check_branch
      %236 = sbr.rel (0) target = $region49
    $region48: #{transformer_block_forward.4} parent=1 // pred_region
      %s238 = ssub.s32 256, 256
      %239 = vsyncadd [#allocation5], %s238
      %s240 = sshll.u32 [#allocation12], 4
      %s241 = int_to_ptr.vmem [resolvable:$true] %s240
      %246 = dma.vmem_to_hbm [thread:$0]  %s241, 256, %s5, [#allocation5], 128, 128, 8
    $region49: #{transformer_block_forward.4} parent=1 // pred_fallthru
      _
    // Predicated region
    $region50: #{transformer_block_forward.4} parent=1 // pred_check
      _
    $region51: #{transformer_block_forward.4} parent=1 // pred_check_branch
      %248 = sbr.rel (0) target = $region53
    $region52: #{transformer_block_forward.4} parent=1 // pred_region
      %249 = dma.done [#allocation5], 256
    $region53: #{transformer_block_forward.4} parent=1 // pred_fallthru
      _
    %250 = vsyncpa [#allocation4], 1
    %251 = vsyncpa [#allocation7], 1
    %252 = vsyncpa [#allocation10], 1
    %253 = vsyncpa [#allocation5], 1

// kernel: transformer_block_forward.6
$region0: #{transformer_block_forward.6}
  #allocation0 [shape = 'u32[]', space=smem, size = 0x4, offset = 0x4, fixed_abs, tag = 'smem constant byte address 0x4 - core index']
  #allocation1 [shape = 'u32[144,128]{1,0:T(1,128)}', space=vmem, size = 0x12000, scoped, tag = 'internal scratch']
  %s0 = inlined_call_operand.hbm [shape: f32[16,32], index: 0, kind: input, shape index: {}]
  %s1 = inlined_call_operand.hbm [shape: f32[32,32], index: 1, kind: input, shape index: {}]
  %s2 = inlined_call_operand.hbm [shape: f32[1,32], index: 2, kind: input, shape index: {}]
  %s3 = inlined_call_operand.hbm [shape: f32[16,32], index: 3, kind: input, shape index: {}]
  %s4 = inlined_call_operand.hbm [shape: f32[16,32], index: 4, kind: output, shape index: {}]
  %s5 = sld [smem:[#allocation0]]
  $region42: #{transformer_block_forward.6} parent=0
    _
  %s7 = ssub.s32 1, %s5
  %s8 = scalar_select 0, %s7, %s5
  $region1: #{transformer_block_forward.6} parent=0
    #allocation2 [shape = 'u8[8192]{0}', space=vmem, size = 0x2000, scoped, tag = 'input window, operand 0, single buffered']
    #allocation3 [shape = 's32[1]{0}', space=sflag, size = 0x4, scoped, tag = 'scoped memory for transformer_block_forward.6']
    #allocation4 [shape = 's32[1]{0}', space=sflag, size = 0x4, scoped, tag = 'scoped memory for transformer_block_forward.6']
    #allocation5 [shape = 'u8[16384]{0}', space=vmem, size = 0x4000, scoped, tag = 'input window, operand 1, single buffered']
    #allocation6 [shape = 's32[1]{0}', space=sflag, size = 0x4, scoped, tag = 'scoped memory for transformer_block_forward.6']
    #allocation7 [shape = 'u8[512]{0}', space=vmem, size = 0x400, scoped, tag = 'input window, operand 2, single buffered']
    #allocation8 [shape = 'u8[8192]{0}', space=vmem, size = 0x2000, scoped, tag = 'input window, operand 3, single buffered']
    #allocation9 [shape = 's32[1]{0}', space=sflag, size = 0x4, scoped, tag = 'scoped memory for transformer_block_forward.6']
    #allocation10 [shape = 'u8[8192]{0}', space=vmem, size = 0x2000, scoped, tag = 'output window, operand 0, single buffered']
    %9 = vsyncpa [#allocation3], 0
    %10 = vsyncpa [#allocation6], 0
    %11 = vsyncpa [#allocation9], 0
    %12 = vsyncpa [#allocation4], 0
    // Predicated region
    $region2: #{transformer_block_forward.6} parent=1 // pred_check
      _
    $region3: #{transformer_block_forward.6} parent=1 // pred_check_branch
      %14 = sbr.rel (0) target = $region5
    $region4: #{transformer_block_forward.6} parent=1 // pred_region
      %s16 = ssub.s32 256, 256
      %17 = vsyncadd [#allocation3], %s16
      %s18 = sshll.u32 [#allocation2], 4
      %s19 = int_to_ptr.vmem [resolvable:$true] %s18
      %24 = dma.hbm_to_vmem [thread:$0]  %s0, 256, %s19, [#allocation3], 128, 128, 8
    $region5: #{transformer_block_forward.6} parent=1 // pred_fallthru
      _
    // Predicated region
    $region6: #{transformer_block_forward.6} parent=1 // pred_check
      _
    $region7: #{transformer_block_forward.6} parent=1 // pred_check_branch
      %26 = sbr.rel (0) target = $region9
    $region8: #{transformer_block_forward.6} parent=1 // pred_region
      %s28 = ssub.s32 512, 512
      %29 = vsyncadd [#allocation6], %s28
      %s30 = sshll.u32 [#allocation5], 4
      %s31 = int_to_ptr.vmem [resolvable:$true] %s30
      %36 = dma.hbm_to_vmem [thread:$0]  %s1, 512, %s31, [#allocation6], 128, 128, 8
    $region9: #{transformer_block_forward.6} parent=1 // pred_fallthru
      _
    // Predicated region
    $region10: #{transformer_block_forward.6} parent=1 // pred_check
      _
    $region11: #{transformer_block_forward.6} parent=1 // pred_check_branch
      %38 = sbr.rel (0) target = $region13
    $region12: #{transformer_block_forward.6} parent=1 // pred_region
      %s40 = ssub.s32 16, 16
      %41 = vsyncadd [#allocation6], %s40
      %s43 = sshll.u32 [#allocation7], 4
      %s44 = int_to_ptr.vmem [resolvable:$true] %s43
      %46 = dma.hbm_to_vmem [thread:$0]  %s2, 16, %s44, [#allocation6]
    $region13: #{transformer_block_forward.6} parent=1 // pred_fallthru
      _
    // Predicated region
    $region14: #{transformer_block_forward.6} parent=1 // pred_check
      _
    $region15: #{transformer_block_forward.6} parent=1 // pred_check_branch
      %48 = sbr.rel (0) target = $region17
    $region16: #{transformer_block_forward.6} parent=1 // pred_region
      %s50 = ssub.s32 256, 256
      %51 = vsyncadd [#allocation9], %s50
      %s52 = sshll.u32 [#allocation8], 4
      %s53 = int_to_ptr.vmem [resolvable:$true] %s52
      %58 = dma.hbm_to_vmem [thread:$0]  %s3, 256, %s53, [#allocation9], 128, 128, 8
    $region17: #{transformer_block_forward.6} parent=1 // pred_fallthru
      _
    // Predicated region
    $region18: #{transformer_block_forward.6} parent=1 // pred_check
      _
    $region19: #{transformer_block_forward.6} parent=1 // pred_check_branch
      %60 = sbr.rel (0) target = $region21
    $region20: #{transformer_block_forward.6} parent=1 // pred_region
      %61 = dma.done [#allocation3], 256
    $region21: #{transformer_block_forward.6} parent=1 // pred_fallthru
      _
    // Predicated region
    $region22: #{transformer_block_forward.6} parent=1 // pred_check
      _
    $region23: #{transformer_block_forward.6} parent=1 // pred_check_branch
      %63 = sbr.rel (0) target = $region25
    $region24: #{transformer_block_forward.6} parent=1 // pred_region
      %64 = dma.done [#allocation6], 512
    $region25: #{transformer_block_forward.6} parent=1 // pred_fallthru
      _
    // Predicated region
    $region26: #{transformer_block_forward.6} parent=1 // pred_check
      _
    $region27: #{transformer_block_forward.6} parent=1 // pred_check_branch
      %66 = sbr.rel (0) target = $region29
    $region28: #{transformer_block_forward.6} parent=1 // pred_region
      %67 = dma.done [#allocation6], 16
    $region29: #{transformer_block_forward.6} parent=1 // pred_fallthru
      _
    // Predicated region
    $region30: #{transformer_block_forward.6} parent=1 // pred_check
      _
    $region31: #{transformer_block_forward.6} parent=1 // pred_check_branch
      %69 = sbr.rel (0) target = $region33
    $region32: #{transformer_block_forward.6} parent=1 // pred_region
      %70 = dma.done [#allocation9], 256
    $region33: #{transformer_block_forward.6} parent=1 // pred_fallthru
      _
    %v71 = vld [vmem:[#allocation2] sm:$0xff]
    %v72 = vld [vmem:[#allocation2 + $0x8] sm:$0xff]
    %v73 = vld [vmem:[#allocation5] sm:$0xff]
    %v74 = vld [vmem:[#allocation5 + $0x8] sm:$0xff]
    %v75 = vld [vmem:[#allocation5 + $0x10] sm:$0xff]
    %v76 = vld [vmem:[#allocation5 + $0x18] sm:$0xff]
    %v77 = vld [vmem:[#allocation7] sm:$0x1]
    %v79 = vlaneseq
    %v80 = vshrl.u32 %v79, 7
    %v81 = vsub.s32 0, %v80
    %v82 = vrot.slane %v77, %v81
    %vm84 = vcmask 261120
    %v86 = vsel %vm84, %v71, 0
    %v89 = vsel %vm84, %v72, 0
    %91 = vmatprep.subr.mxu0 0.0
    %92 = vmatpush1.msra.mxu0 %v73
    %93 = vmatprep.subr.mxu0 0.0
    %94 = vmatpush1.msra.mxu0 %v74
    %95 = vmatprep.subr.mxu0 0.0
    %96 = vmatpush1.msra.mxu0 %v75
    %97 = vmatprep.subr.mxu0 0.0
    %98 = vmatpush1.msra.mxu0 %v76
    %99 = vmatprep.subr.mxu0 0.0
    %100 = vmatpush1.msra.mxu0 0.0
    %101 = vmatprep.subr.mxu0 0.0
    %102 = vmatpush1.msra.mxu0 0.0
    %103 = vmatprep.subr.mxu0 0.0
    %104 = vmatpush1.msra.mxu0 0.0
    %105 = vmatprep.subr.mxu0 0.0
    %106 = vmatpush1.msra.mxu0 0.0
    %107 = vmatprep.subr.mxu0 0.0
    %108 = vmatpush1.msra.mxu0 0.0
    %109 = vmatprep.subr.mxu0 0.0
    %110 = vmatpush1.msra.mxu0 0.0
    %111 = vmatprep.subr.mxu0 0.0
    %112 = vmatpush1.msra.mxu0 0.0
    %113 = vmatprep.subr.mxu0 0.0
    %114 = vmatpush1.msra.mxu0 0.0
    %115 = vmatprep.subr.mxu0 0.0
    %116 = vmatpush1.msra.mxu0 0.0
    %117 = vmatprep.subr.mxu0 0.0
    %118 = vmatpush1.msra.mxu0 0.0
    %119 = vmatprep.subr.mxu0 0.0
    %120 = vmatpush1.msra.mxu0 0.0
    %121 = vmatprep.subr.mxu0 0.0
    %122 = vmatpush1.msra.mxu0 0.0
    %123 = vmatprep.subr.mxu0 0.0
    %124 = vmatpush1.msra.mxu0 0.0
    %125 = vmatprep.subr.mxu0 0.0
    %126 = vmatpush1.msra.mxu0 0.0
    %127 = vmatprep.subr.mxu0 0.0
    %128 = vmatpush1.msra.mxu0 0.0
    %129 = vmatprep.subr.mxu0 0.0
    %130 = vmatpush1.msra.mxu0 0.0
    %131 = vmatprep.subr.mxu0 0.0
    %132 = vmatpush1.msra.mxu0 0.0
    %133 = vmatprep.subr.mxu0 0.0
    %134 = vmatpush1.msra.mxu0 0.0
    %135 = vmatprep.subr.mxu0 0.0
    %136 = vmatpush1.msra.mxu0 0.0
    %137 = vmatprep.subr.mxu0 0.0
    %138 = vmatpush1.msra.mxu0 0.0
    %139 = vmatprep.subr.mxu0 0.0
    %140 = vmatpush1.msra.mxu0 0.0
    %141 = vmatprep.subr.mxu0 0.0
    %142 = vmatpush1.msra.mxu0 0.0
    %143 = vmatprep.subr.mxu0 0.0
    %144 = vmatpush1.msra.mxu0 0.0
    %145 = vmatprep.subr.mxu0 0.0
    %146 = vmatpush1.msra.mxu0 0.0
    %147 = vmatprep.subr.mxu0 0.0
    %148 = vmatpush1.msra.mxu0 0.0
    %149 = vmatprep.subr.mxu0 0.0
    %150 = vmatpush1.msra.mxu0 0.0
    %151 = vmatprep.subr.mxu0 0.0
    %152 = vmatpush1.msra.mxu0 0.0
    %153 = vmatprep.subr.mxu0 0.0
    %154 = vmatpush1.msra.mxu0 0.0
    %155 = vmatprep.mubr.f32.mxu0 0.0
    %156 = vmatmul.mubr.f32.gmra.mrb[0].mxu0 %v86
    %v157 = vpop.f32.mrb[0].mxu0
    %v158 = vadd.f32 %v82, %v157
    %v159 = vpop.f32.mrb[0].mxu0
    %160 = vmatprep.mubr.f32.mxu0 0.0
    %161 = vmatmul.mubr.f32.gmra.mrb[0].mxu0 %v89
    %v162 = vpop.f32.mrb[0].mxu0
    %v163 = vadd.f32 %v82, %v162
    %v164 = vpop.f32.mrb[0].mxu0
    %165 = vdwg.mxu0
    %v166 = vld [vmem:[#allocation8] sm:$0xff]
    %v167 = vld [vmem:[#allocation8 + $0x8] sm:$0xff]
    %v168 = vadd.f32 %v158, %v166
    %v169 = vadd.f32 %v163, %v167
    %170 = vst.msk [vmem:[#allocation10] sm:$0xff] %vm84, %v168
    %171 = vst.msk [vmem:[#allocation10 + $0x8] sm:$0xff] %vm84, %v169
    // Predicated region
    $region34: #{transformer_block_forward.6} parent=1 // pred_check
      _
    $region35: #{transformer_block_forward.6} parent=1 // pred_check_branch
      %173 = sbr.rel (0) target = $region37
    $region36: #{transformer_block_forward.6} parent=1 // pred_region
      %s175 = ssub.s32 256, 256
      %176 = vsyncadd [#allocation4], %s175
      %s177 = sshll.u32 [#allocation10], 4
      %s178 = int_to_ptr.vmem [resolvable:$true] %s177
      %183 = dma.vmem_to_hbm [thread:$0]  %s178, 256, %s4, [#allocation4], 128, 128, 8
    $region37: #{transformer_block_forward.6} parent=1 // pred_fallthru
      _
    // Predicated region
    $region38: #{transformer_block_forward.6} parent=1 // pred_check
      _
    $region39: #{transformer_block_forward.6} parent=1 // pred_check_branch
      %185 = sbr.rel (0) target = $region41
    $region40: #{transformer_block_forward.6} parent=1 // pred_region
      %186 = dma.done [#allocation4], 256
    $region41: #{transformer_block_forward.6} parent=1 // pred_fallthru
      _
    %187 = vsyncpa [#allocation3], 1
    %188 = vsyncpa [#allocation6], 1
    %189 = vsyncpa [#allocation9], 1
    %190 = vsyncpa [#allocation4], 1

// kernel: transformer_block_forward.5
$region0: #{transformer_block_forward.5}
  #allocation0 [shape = 'u32[]', space=smem, size = 0x4, offset = 0x4, fixed_abs, tag = 'smem constant byte address 0x4 - core index']
  #allocation1 [shape = 'u32[144,128]{1,0:T(1,128)}', space=vmem, size = 0x12000, scoped, tag = 'internal scratch']
  %s0 = inlined_call_operand.hbm [shape: f32[16,96], index: 0, kind: input, shape index: {}]
  %s1 = inlined_call_operand.hbm [shape: f32[16,32], index: 1, kind: output, shape index: {}]
  %s2 = sld [smem:[#allocation0]]
  $region41: #{transformer_block_forward.5} parent=0
    _
  %s4 = ssub.s32 1, %s2
  %s5 = scalar_select 0, %s4, %s2
  $region1: #{transformer_block_forward.5} parent=0
    #allocation2 [shape = 'u8[8192]{0}', space=vmem, size = 0x2000, scoped, tag = 'input window, operand 0']
    #allocation3 [shape = 's32[2]{0}', space=sflag, size = 0x8, scoped, tag = 'scoped memory for transformer_block_forward.5']
    #allocation4 [shape = 's32[2]{0}', space=sflag, size = 0x8, scoped, tag = 'scoped memory for transformer_block_forward.5']
    #allocation5 [shape = 'u8[8192]{0}', space=vmem, size = 0x2000, scoped, tag = 'output window, operand 0']
    %6 = vsyncpa [#allocation3], 0
    %s7 = scalar_lea.sflag [#allocation3], 1
    %8 = vsyncpa %s7, 0
    %9 = vsyncpa [#allocation4], 0
    %s10 = scalar_lea.sflag [#allocation4], 1
    %11 = vsyncpa %s10, 0
    loop: start=0, step=1, limit=4
    $region2: #{transformer_block_forward.5} parent=1 // loop_pre_header
      _
    $region3: #{transformer_block_forward.5} parent=1 // loop_header
      %s13 = sphi 0, %s17
      %p14 = scmp.ge.s32.totalorder %s13, 4
      %s23 = sphi 0, %s25
      %s26 = sphi 0, %s23
      %s27 = sphi 0, %s26
      %s43 = sphi 0, %s27
      %s49 = sphi 0, %s51
      %s52 = sphi 0, %s49
      %s53 = sphi 0, %s52
      %s69 = sphi 0, %s53
    $region4: #{transformer_block_forward.5} parent=1 // loop_header_branch
      %16 = sbr.rel (%p14) target = $region8
    $region5: #{transformer_block_forward.5} parent=1 // loop_body
      %s18 = ssub.s32 %s13, 1
      %s19 = ssub.s32 %s13, 2
      %s20 = sadd.s32 %s13, 1
      %s21 = ssub.s32 %s13, %s20
      %p22 = scmp.eq.s32.totalorder %s21, 0
      %s24 = sadd.s32 %s23, 1
      %s25 = scalar_select %p22, %s23, %s24
      %p28 = pneg %p22
      %p29 = scmp.eq.s32.totalorder %s13, 1
      %p30 = por %p28, %p29
      %p31 = scmp.ne.s32.totalorder %s23, %s26
      %p32 = scmp.eq.s32.totalorder %s13, 0
      %p33 = por %p31, %p32
      %p34 = scmp.ne.s32.totalorder %s23, %s26
      %p35 = scmp.eq.s32.totalorder %s18, 1
      %p36 = por %p34, %p35
      %p37 = scmp.ne.s32.totalorder %s26, %s27
      %p38 = scmp.eq.s32.totalorder %s18, 0
      %p39 = por %p37, %p38
      %p40 = scmp.ne.s32.totalorder %s26, %s27
      %p41 = scmp.eq.s32.totalorder %s19, 1
      %p42 = por %p40, %p41
      %p44 = scmp.ne.s32.totalorder %s27, %s43
      %p45 = scmp.eq.s32.totalorder %s19, 0
      %p46 = por %p44, %p45
      %s47 = ssub.s32 %s13, %s20
      %p48 = scmp.eq.s32.totalorder %s47, 0
      %s50 = sadd.s32 %s49, 1
      %s51 = scalar_select %p48, %s49, %s50
      %p54 = pneg %p48
      %p55 = scmp.eq.s32.totalorder %s13, 1
      %p56 = por %p54, %p55
      %p57 = scmp.ne.s32.totalorder %s49, %s52
      %p58 = scmp.eq.s32.totalorder %s13, 0
      %p59 = por %p57, %p58
      %p60 = scmp.ne.s32.totalorder %s49, %s52
      %p61 = scmp.eq.s32.totalorder %s18, 1
      %p62 = por %p60, %p61
      %p63 = scmp.ne.s32.totalorder %s52, %s53
      %p64 = scmp.eq.s32.totalorder %s18, 0
      %p65 = por %p63, %p64
      %p66 = scmp.ne.s32.totalorder %s52, %s53
      %p67 = scmp.eq.s32.totalorder %s19, 1
      %p68 = por %p66, %p67
      %p70 = scmp.ne.s32.totalorder %s53, %s69
      %p71 = scmp.eq.s32.totalorder %s19, 0
      %p72 = por %p70, %p71
      %p73 = scmp.le.s32.totalorder 1, %s13
      %p74 = scmp.lt.s32.totalorder %s13, 3
      %p75 = pnand %p73, %p74
      %p76 = pneg %p75
      // Predicated region
      $region9: #{transformer_block_forward.5} parent=5 // pred_check
        _
      $region10: #{transformer_block_forward.5} parent=5 // pred_check_branch
        %78 = sbr.rel (%p75) target = $region12
      $region11: #{transformer_block_forward.5} parent=5 // pred_region
        %s79 = ssub.s32 %s13, 1
      $region12: #{transformer_block_forward.5} parent=5 // pred_fallthru
        _
      %p80 = scmp.lt.s32.totalorder %s13, 2
      // Predicated region
      $region13: #{transformer_block_forward.5} parent=5 // pred_check
        %p81 = pneg %p80
      $region14: #{transformer_block_forward.5} parent=5 // pred_check_branch
        %83 = sbr.rel (%p81) target = $region16
      $region15: #{transformer_block_forward.5} parent=5 // pred_region
        // Predicated region
        $region17: #{transformer_block_forward.5} parent=15 // pred_check
          %p84 = pneg %p33
        $region18: #{transformer_block_forward.5} parent=15 // pred_check_branch
          %86 = sbr.rel (%p84) target = $region20
        $region19: #{transformer_block_forward.5} parent=15 // pred_region
          %s87 = sand.u32 %s23, 1
          %s88 = scalar_lea.sflag [#allocation3], %s87
          %s89 = sand.u32 %s23, 1
          %s90 = smul.addr %s89, 8
          %s91 = scalar_lea.vmem [#allocation2], %s90
          %s93 = ssub.s32 128, 128
          %94 = vsyncadd %s88, %s93
          %s95 = smul.addr %s13, 128
          %s96 = scalar_lea.hbm %s0, %s95
          %s98 = sshll.u32 %s91, 4
          %s99 = int_to_ptr.vmem [resolvable:$true] %s98
          %101 = dma.hbm_to_vmem [thread:$0]  %s96, 128, %s99, %s88
        $region20: #{transformer_block_forward.5} parent=15 // pred_fallthru
          _
      $region16: #{transformer_block_forward.5} parent=5 // pred_fallthru
        _
      %p102 = scmp.le.s32.totalorder 1, %s13
      %p103 = scmp.lt.s32.totalorder %s13, 3
      %p104 = pnand %p102, %p103
      %p105 = pneg %p104
      // Predicated region
      $region21: #{transformer_block_forward.5} parent=5 // pred_check
        _
      $region22: #{transformer_block_forward.5} parent=5 // pred_check_branch
        %107 = sbr.rel (%p104) target = $region24
      $region23: #{transformer_block_forward.5} parent=5 // pred_region
        %s108 = ssub.s32 %s13, 1
        %s109 = sand.u32 %s26, 1
        %s110 = scalar_lea.sflag [#allocation3], %s109
        %s111 = sand.u32 %s26, 1
        %s112 = smul.addr %s111, 8
        %s113 = scalar_lea.vmem [#allocation2], %s112
        // Predicated region
        $region25: #{transformer_block_forward.5} parent=23 // pred_check
          %p114 = pneg %p39
        $region26: #{transformer_block_forward.5} parent=23 // pred_check_branch
          %116 = sbr.rel (%p114) target = $region28
        $region27: #{transformer_block_forward.5} parent=23 // pred_region
          %117 = dma.done %s110, 128
        $region28: #{transformer_block_forward.5} parent=23 // pred_fallthru
          _
        %s118 = sand.u32 %s26, 1
        %s119 = scalar_lea.sflag [#allocation3], %s118
        %s120 = sand.u32 %s26, 1
        %s121 = smul.addr %s120, 8
        %s122 = scalar_lea.vmem [#allocation2], %s121
        %p123 = pneg %p39
        %p124 = pneg %p36
        %p125 = pneg %p65
        %p126 = pneg %p62
        %s127 = sand.u32 %s52, 1
        %s128 = scalar_lea.sflag [#allocation4], %s127
        %s129 = sand.u32 %s52, 1
        %s130 = smul.addr %s129, 8
        %s131 = scalar_lea.vmem [#allocation5], %s130
        %v132 = vld [vmem:[%s113] sm:$0xff]
        %v133 = vlaneseq
        %v134 = vshrl.u32 %v133, 7
        %v135 = vlaneseq
        %v136 = vand.u32 %v135, 127
        %vm137 = vcmp.le.s32.totalorder %v136, %v134
        %139 = vrot.lane.b32.xlu0 %v132, 96
        %v140 = vpop.permute.xlu0 %139
        %vm141 = vcmask 64512
        %v142 = vsel %vm141, %v132, 0
        %v144 = vsel %vm141, %v140, 0
        %146 = vmatprep.subr.mxu0 0.0
        %147 = vmatpush1.xpose.msra.mxu0 %v144
        %148 = vmatprep.subr.mxu0 0.0
        %149 = vmatpush1.xpose.msra.mxu0 0.0
        %150 = vmatprep.subr.mxu0 0.0
        %151 = vmatpush1.xpose.msra.mxu0 0.0
        %152 = vmatprep.subr.mxu0 0.0
        %153 = vmatpush1.xpose.msra.mxu0 0.0
        %154 = vmatprep.subr.mxu0 0.0
        %155 = vmatpush1.xpose.msra.mxu0 0.0
        %156 = vmatprep.subr.mxu0 0.0
        %157 = vmatpush1.xpose.msra.mxu0 0.0
        %158 = vmatprep.subr.mxu0 0.0
        %159 = vmatpush1.xpose.msra.mxu0 0.0
        %160 = vmatprep.subr.mxu0 0.0
        %161 = vmatpush1.xpose.msra.mxu0 0.0
        %162 = vmatprep.subr.mxu0 0.0
        %163 = vmatpush1.xpose.msra.mxu0 0.0
        %164 = vmatprep.subr.mxu0 0.0
        %165 = vmatpush1.xpose.msra.mxu0 0.0
        %166 = vmatprep.subr.mxu0 0.0
        %167 = vmatpush1.xpose.msra.mxu0 0.0
        %168 = vmatprep.subr.mxu0 0.0
        %169 = vmatpush1.xpose.msra.mxu0 0.0
        %170 = vmatprep.subr.mxu0 0.0
        %171 = vmatpush1.xpose.msra.mxu0 0.0
        %172 = vmatprep.subr.mxu0 0.0
        %173 = vmatpush1.xpose.msra.mxu0 0.0
        %174 = vmatprep.subr.mxu0 0.0
        %175 = vmatpush1.xpose.msra.mxu0 0.0
        %176 = vmatprep.subr.mxu0 0.0
        %177 = vmatpush1.xpose.msra.mxu0 0.0
        %178 = vmatprep.subr.mxu0 0.0
        %179 = vmatpush1.xpose.msra.mxu0 0.0
        %180 = vmatprep.subr.mxu0 0.0
        %181 = vmatpush1.xpose.msra.mxu0 0.0
        %182 = vmatprep.subr.mxu0 0.0
        %183 = vmatpush1.xpose.msra.mxu0 0.0
        %184 = vmatprep.subr.mxu0 0.0
        %185 = vmatpush1.xpose.msra.mxu0 0.0
        %186 = vmatprep.subr.mxu0 0.0
        %187 = vmatpush1.xpose.msra.mxu0 0.0
        %188 = vmatprep.subr.mxu0 0.0
        %189 = vmatpush1.xpose.msra.mxu0 0.0
        %190 = vmatprep.subr.mxu0 0.0
        %191 = vmatpush1.xpose.msra.mxu0 0.0
        %192 = vmatprep.subr.mxu0 0.0
        %193 = vmatpush1.xpose.msra.mxu0 0.0
        %194 = vmatprep.subr.mxu0 0.0
        %195 = vmatpush1.xpose.msra.mxu0 0.0
        %196 = vmatprep.subr.mxu0 0.0
        %197 = vmatpush1.xpose.msra.mxu0 0.0
        %198 = vmatprep.subr.mxu0 0.0
        %199 = vmatpush1.xpose.msra.mxu0 0.0
        %200 = vmatprep.subr.mxu0 0.0
        %201 = vmatpush1.xpose.msra.mxu0 0.0
        %202 = vmatprep.subr.mxu0 0.0
        %203 = vmatpush1.xpose.msra.mxu0 0.0
        %204 = vmatprep.subr.mxu0 0.0
        %205 = vmatpush1.xpose.msra.mxu0 0.0
        %206 = vmatprep.subr.mxu0 0.0
        %207 = vmatpush1.xpose.msra.mxu0 0.0
        %208 = vmatprep.subr.mxu0 0.0
        %209 = vmatpush1.xpose.msra.mxu0 0.0
        %210 = vmatprep.mubr.f32.mxu0 0.0
        %211 = vmatmul.mubr.f32.gmra.mrb[0].mxu0 %v142
        %v212 = vpop.f32.mrb[0].mxu0
        %v213 = vadd.f32 0.0, %v212
        %v214 = vpop.f32.mrb[0].mxu0
        %215 = vdwg.mxu0
        %v216 = vmul.f32 %v213, 0.35355338
        %v217 = vsel %vm137, %v216, -inf
        %v218 = vsel %vm141, %v217, -inf
        %219 = vmax.xlane.f32.xlu0 %v218
        %v220 = vpop.xlane.xlu0 %219
        %v221 = vsub.f32 %v217, %v220
        %v222 = vmul.f32 %v221, 1.442695
        %v223 = vpow.pop %v222
        %v224 = vsel %vm141, %v223, 0.0
        %225 = vadd.xlane.f32.xlu0 %v224
        %v226 = vpop.xlane.xlu0 %225
        %227 = vrot.lane.b32.xlu0 %v132, 64
        %v228 = vpop.permute.xlu0 %227
        %v231 = vsel %vm141, %v223, 0
        %233 = vmatprep.subr.mxu0 0.0
        %234 = vmatpush1.msra.mxu0 %v228
        %235 = vmatprep.subr.mxu0 0.0
        %236 = vmatpush1.msra.mxu0 0.0
        %237 = vmatprep.subr.mxu0 0.0
        %238 = vmatpush1.msra.mxu0 0.0
        %239 = vmatprep.subr.mxu0 0.0
        %240 = vmatpush1.msra.mxu0 0.0
        %241 = vmatprep.subr.mxu0 0.0
        %242 = vmatpush1.msra.mxu0 0.0
        %243 = vmatprep.subr.mxu0 0.0
        %244 = vmatpush1.msra.mxu0 0.0
        %245 = vmatprep.subr.mxu0 0.0
        %246 = vmatpush1.msra.mxu0 0.0
        %247 = vmatprep.subr.mxu0 0.0
        %248 = vmatpush1.msra.mxu0 0.0
        %249 = vmatprep.subr.mxu0 0.0
        %250 = vmatpush1.msra.mxu0 0.0
        %251 = vmatprep.subr.mxu0 0.0
        %252 = vmatpush1.msra.mxu0 0.0
        %253 = vmatprep.subr.mxu0 0.0
        %254 = vmatpush1.msra.mxu0 0.0
        %255 = vmatprep.subr.mxu0 0.0
        %256 = vmatpush1.msra.mxu0 0.0
        %257 = vmatprep.subr.mxu0 0.0
        %258 = vmatpush1.msra.mxu0 0.0
        %259 = vmatprep.subr.mxu0 0.0
        %260 = vmatpush1.msra.mxu0 0.0
        %261 = vmatprep.subr.mxu0 0.0
        %262 = vmatpush1.msra.mxu0 0.0
        %263 = vmatprep.subr.mxu0 0.0
        %264 = vmatpush1.msra.mxu0 0.0
        %265 = vmatprep.subr.mxu0 0.0
        %266 = vmatpush1.msra.mxu0 0.0
        %267 = vmatprep.subr.mxu0 0.0
        %268 = vmatpush1.msra.mxu0 0.0
        %269 = vmatprep.subr.mxu0 0.0
        %270 = vmatpush1.msra.mxu0 0.0
        %271 = vmatprep.subr.mxu0 0.0
        %272 = vmatpush1.msra.mxu0 0.0
        %273 = vmatprep.subr.mxu0 0.0
        %274 = vmatpush1.msra.mxu0 0.0
        %275 = vmatprep.subr.mxu0 0.0
        %276 = vmatpush1.msra.mxu0 0.0
        %277 = vmatprep.subr.mxu0 0.0
        %278 = vmatpush1.msra.mxu0 0.0
        %279 = vmatprep.subr.mxu0 0.0
        %280 = vmatpush1.msra.mxu0 0.0
        %281 = vmatprep.subr.mxu0 0.0
        %282 = vmatpush1.msra.mxu0 0.0
        %283 = vmatprep.subr.mxu0 0.0
        %284 = vmatpush1.msra.mxu0 0.0
        %285 = vmatprep.subr.mxu0 0.0
        %286 = vmatpush1.msra.mxu0 0.0
        %287 = vmatprep.subr.mxu0 0.0
        %288 = vmatpush1.msra.mxu0 0.0
        %289 = vmatprep.subr.mxu0 0.0
        %290 = vmatpush1.msra.mxu0 0.0
        %291 = vmatprep.subr.mxu0 0.0
        %292 = vmatpush1.msra.mxu0 0.0
        %293 = vmatprep.subr.mxu0 0.0
        %294 = vmatpush1.msra.mxu0 0.0
        %295 = vmatprep.subr.mxu0 0.0
        %296 = vmatpush1.msra.mxu0 0.0
        %297 = vmatprep.mubr.f32.mxu0 0.0
        %298 = vmatmul.mubr.f32.gmra.mrb[0].mxu0 %v231
        %v299 = vpop.f32.mrb[0].mxu0
        %v300 = vadd.f32 0.0, %v299
        %v301 = vpop.f32.mrb[0].mxu0
        %302 = vdwg.mxu0
        %v303 = vrcp.pop %v226
        %v304 = vmul.f32 1.0, %v303
        %v305 = vmul.f32 %v300, %v304
        %306 = vrot.lane.b32.xlu0 %v132, 120
        %v307 = vpop.permute.xlu0 %306
        %308 = vrot.lane.b32.xlu0 %v132, 88
        %v309 = vpop.permute.xlu0 %308
        %v310 = vsel %vm141, %v307, 0
        %v312 = vsel %vm141, %v309, 0
        %314 = vmatprep.subr.mxu0 0.0
        %315 = vmatpush1.xpose.msra.mxu0 %v312
        %316 = vmatprep.subr.mxu0 0.0
        %317 = vmatpush1.xpose.msra.mxu0 0.0
        %318 = vmatprep.subr.mxu0 0.0
        %319 = vmatpush1.xpose.msra.mxu0 0.0
        %320 = vmatprep.subr.mxu0 0.0
        %321 = vmatpush1.xpose.msra.mxu0 0.0
        %322 = vmatprep.subr.mxu0 0.0
        %323 = vmatpush1.xpose.msra.mxu0 0.0
        %324 = vmatprep.subr.mxu0 0.0
        %325 = vmatpush1.xpose.msra.mxu0 0.0
        %326 = vmatprep.subr.mxu0 0.0
        %327 = vmatpush1.xpose.msra.mxu0 0.0
        %328 = vmatprep.subr.mxu0 0.0
        %329 = vmatpush1.xpose.msra.mxu0 0.0
        %330 = vmatprep.subr.mxu0 0.0
        %331 = vmatpush1.xpose.msra.mxu0 0.0
        %332 = vmatprep.subr.mxu0 0.0
        %333 = vmatpush1.xpose.msra.mxu0 0.0
        %334 = vmatprep.subr.mxu0 0.0
        %335 = vmatpush1.xpose.msra.mxu0 0.0
        %336 = vmatprep.subr.mxu0 0.0
        %337 = vmatpush1.xpose.msra.mxu0 0.0
        %338 = vmatprep.subr.mxu0 0.0
        %339 = vmatpush1.xpose.msra.mxu0 0.0
        %340 = vmatprep.subr.mxu0 0.0
        %341 = vmatpush1.xpose.msra.mxu0 0.0
        %342 = vmatprep.subr.mxu0 0.0
        %343 = vmatpush1.xpose.msra.mxu0 0.0
        %344 = vmatprep.subr.mxu0 0.0
        %345 = vmatpush1.xpose.msra.mxu0 0.0
        %346 = vmatprep.subr.mxu0 0.0
        %347 = vmatpush1.xpose.msra.mxu0 0.0
        %348 = vmatprep.subr.mxu0 0.0
        %349 = vmatpush1.xpose.msra.mxu0 0.0
        %350 = vmatprep.subr.mxu0 0.0
        %351 = vmatpush1.xpose.msra.mxu0 0.0
        %352 = vmatprep.subr.mxu0 0.0
        %353 = vmatpush1.xpose.msra.mxu0 0.0
        %354 = vmatprep.subr.mxu0 0.0
        %355 = vmatpush1.xpose.msra.mxu0 0.0
        %356 = vmatprep.subr.mxu0 0.0
        %357 = vmatpush1.xpose.msra.mxu0 0.0
        %358 = vmatprep.subr.mxu0 0.0
        %359 = vmatpush1.xpose.msra.mxu0 0.0
        %360 = vmatprep.subr.mxu0 0.0
        %361 = vmatpush1.xpose.msra.mxu0 0.0
        %362 = vmatprep.subr.mxu0 0.0
        %363 = vmatpush1.xpose.msra.mxu0 0.0
        %364 = vmatprep.subr.mxu0 0.0
        %365 = vmatpush1.xpose.msra.mxu0 0.0
        %366 = vmatprep.subr.mxu0 0.0
        %367 = vmatpush1.xpose.msra.mxu0 0.0
        %368 = vmatprep.subr.mxu0 0.0
        %369 = vmatpush1.xpose.msra.mxu0 0.0
        %370 = vmatprep.subr.mxu0 0.0
        %371 = vmatpush1.xpose.msra.mxu0 0.0
        %372 = vmatprep.subr.mxu0 0.0
        %373 = vmatpush1.xpose.msra.mxu0 0.0
        %374 = vmatprep.subr.mxu0 0.0
        %375 = vmatpush1.xpose.msra.mxu0 0.0
        %376 = vmatprep.subr.mxu0 0.0
        %377 = vmatpush1.xpose.msra.mxu0 0.0
        %378 = vmatprep.mubr.f32.mxu0 0.0
        %379 = vmatmul.mubr.f32.gmra.mrb[0].mxu0 %v310
        %v380 = vpop.f32.mrb[0].mxu0
        %v381 = vadd.f32 0.0, %v380
        %v382 = vpop.f32.mrb[0].mxu0
        %383 = vdwg.mxu0
        %v384 = vmul.f32 %v381, 0.35355338
        %v385 = vsel %vm137, %v384, -inf
        %v386 = vsel %vm141, %v385, -inf
        %387 = vmax.xlane.f32.xlu0 %v386
        %v388 = vpop.xlane.xlu0 %387
        %v389 = vsub.f32 %v385, %v388
        %v390 = vmul.f32 %v389, 1.442695
        %v391 = vpow.pop %v390
        %v392 = vsel %vm141, %v391, 0.0
        %393 = vadd.xlane.f32.xlu0 %v392
        %v394 = vpop.xlane.xlu0 %393
        %395 = vrot.lane.b32.xlu0 %v132, 56
        %v396 = vpop.permute.xlu0 %395
        %v399 = vsel %vm141, %v391, 0
        %401 = vmatprep.subr.mxu0 0.0
        %402 = vmatpush1.msra.mxu0 %v396
        %403 = vmatprep.subr.mxu0 0.0
        %404 = vmatpush1.msra.mxu0 0.0
        %405 = vmatprep.subr.mxu0 0.0
        %406 = vmatpush1.msra.mxu0 0.0
        %407 = vmatprep.subr.mxu0 0.0
        %408 = vmatpush1.msra.mxu0 0.0
        %409 = vmatprep.subr.mxu0 0.0
        %410 = vmatpush1.msra.mxu0 0.0
        %411 = vmatprep.subr.mxu0 0.0
        %412 = vmatpush1.msra.mxu0 0.0
        %413 = vmatprep.subr.mxu0 0.0
        %414 = vmatpush1.msra.mxu0 0.0
        %415 = vmatprep.subr.mxu0 0.0
        %416 = vmatpush1.msra.mxu0 0.0
        %417 = vmatprep.subr.mxu0 0.0
        %418 = vmatpush1.msra.mxu0 0.0
        %419 = vmatprep.subr.mxu0 0.0
        %420 = vmatpush1.msra.mxu0 0.0
        %421 = vmatprep.subr.mxu0 0.0
        %422 = vmatpush1.msra.mxu0 0.0
        %423 = vmatprep.subr.mxu0 0.0
        %424 = vmatpush1.msra.mxu0 0.0
        %425 = vmatprep.subr.mxu0 0.0
        %426 = vmatpush1.msra.mxu0 0.0
        %427 = vmatprep.subr.mxu0 0.0
        %428 = vmatpush1.msra.mxu0 0.0
        %429 = vmatprep.subr.mxu0 0.0
        %430 = vmatpush1.msra.mxu0 0.0
        %431 = vmatprep.subr.mxu0 0.0
        %432 = vmatpush1.msra.mxu0 0.0
        %433 = vmatprep.subr.mxu0 0.0
        %434 = vmatpush1.msra.mxu0 0.0
        %435 = vmatprep.subr.mxu0 0.0
        %436 = vmatpush1.msra.mxu0 0.0
        %437 = vmatprep.subr.mxu0 0.0
        %438 = vmatpush1.msra.mxu0 0.0
        %439 = vmatprep.subr.mxu0 0.0
        %440 = vmatpush1.msra.mxu0 0.0
        %441 = vmatprep.subr.mxu0 0.0
        %442 = vmatpush1.msra.mxu0 0.0
        %443 = vmatprep.subr.mxu0 0.0
        %444 = vmatpush1.msra.mxu0 0.0
        %445 = vmatprep.subr.mxu0 0.0
        %446 = vmatpush1.msra.mxu0 0.0
        %447 = vmatprep.subr.mxu0 0.0
        %448 = vmatpush1.msra.mxu0 0.0
        %449 = vmatprep.subr.mxu0 0.0
        %450 = vmatpush1.msra.mxu0 0.0
        %451 = vmatprep.subr.mxu0 0.0
        %452 = vmatpush1.msra.mxu0 0.0
        %453 = vmatprep.subr.mxu0 0.0
        %454 = vmatpush1.msra.mxu0 0.0
        %455 = vmatprep.subr.mxu0 0.0
        %456 = vmatpush1.msra.mxu0 0.0
        %457 = vmatprep.subr.mxu0 0.0
        %458 = vmatpush1.msra.mxu0 0.0
        %459 = vmatprep.subr.mxu0 0.0
        %460 = vmatpush1.msra.mxu0 0.0
        %461 = vmatprep.subr.mxu0 0.0
        %462 = vmatpush1.msra.mxu0 0.0
        %463 = vmatprep.subr.mxu0 0.0
        %464 = vmatpush1.msra.mxu0 0.0
        %465 = vmatprep.mubr.f32.mxu0 0.0
        %466 = vmatmul.mubr.f32.gmra.mrb[0].mxu0 %v399
        %v467 = vpop.f32.mrb[0].mxu0
        %v468 = vadd.f32 0.0, %v467
        %v469 = vpop.f32.mrb[0].mxu0
        %470 = vdwg.mxu0
        %v471 = vrcp.pop %v394
        %v472 = vmul.f32 1.0, %v471
        %v473 = vmul.f32 %v468, %v472
        %474 = vrot.lane.b32.xlu0 %v132, 112
        %v475 = vpop.permute.xlu0 %474
        %476 = vrot.lane.b32.xlu0 %v132, 80
        %v477 = vpop.permute.xlu0 %476
        %v478 = vsel %vm141, %v475, 0
        %v480 = vsel %vm141, %v477, 0
        %482 = vmatprep.subr.mxu0 0.0
        %483 = vmatpush1.xpose.msra.mxu0 %v480
        %484 = vmatprep.subr.mxu0 0.0
        %485 = vmatpush1.xpose.msra.mxu0 0.0
        %486 = vmatprep.subr.mxu0 0.0
        %487 = vmatpush1.xpose.msra.mxu0 0.0
        %488 = vmatprep.subr.mxu0 0.0
        %489 = vmatpush1.xpose.msra.mxu0 0.0
        %490 = vmatprep.subr.mxu0 0.0
        %491 = vmatpush1.xpose.msra.mxu0 0.0
        %492 = vmatprep.subr.mxu0 0.0
        %493 = vmatpush1.xpose.msra.mxu0 0.0
        %494 = vmatprep.subr.mxu0 0.0
        %495 = vmatpush1.xpose.msra.mxu0 0.0
        %496 = vmatprep.subr.mxu0 0.0
        %497 = vmatpush1.xpose.msra.mxu0 0.0
        %498 = vmatprep.subr.mxu0 0.0
        %499 = vmatpush1.xpose.msra.mxu0 0.0
        %500 = vmatprep.subr.mxu0 0.0
        %501 = vmatpush1.xpose.msra.mxu0 0.0
        %502 = vmatprep.subr.mxu0 0.0
        %503 = vmatpush1.xpose.msra.mxu0 0.0
        %504 = vmatprep.subr.mxu0 0.0
        %505 = vmatpush1.xpose.msra.mxu0 0.0
        %506 = vmatprep.subr.mxu0 0.0
        %507 = vmatpush1.xpose.msra.mxu0 0.0
        %508 = vmatprep.subr.mxu0 0.0
        %509 = vmatpush1.xpose.msra.mxu0 0.0
        %510 = vmatprep.subr.mxu0 0.0
        %511 = vmatpush1.xpose.msra.mxu0 0.0
        %512 = vmatprep.subr.mxu0 0.0
        %513 = vmatpush1.xpose.msra.mxu0 0.0
        %514 = vmatprep.subr.mxu0 0.0
        %515 = vmatpush1.xpose.msra.mxu0 0.0
        %516 = vmatprep.subr.mxu0 0.0
        %517 = vmatpush1.xpose.msra.mxu0 0.0
        %518 = vmatprep.subr.mxu0 0.0
        %519 = vmatpush1.xpose.msra.mxu0 0.0
        %520 = vmatprep.subr.mxu0 0.0
        %521 = vmatpush1.xpose.msra.mxu0 0.0
        %522 = vmatprep.subr.mxu0 0.0
        %523 = vmatpush1.xpose.msra.mxu0 0.0
        %524 = vmatprep.subr.mxu0 0.0
        %525 = vmatpush1.xpose.msra.mxu0 0.0
        %526 = vmatprep.subr.mxu0 0.0
        %527 = vmatpush1.xpose.msra.mxu0 0.0
        %528 = vmatprep.subr.mxu0 0.0
        %529 = vmatpush1.xpose.msra.mxu0 0.0
        %530 = vmatprep.subr.mxu0 0.0
        %531 = vmatpush1.xpose.msra.mxu0 0.0
        %532 = vmatprep.subr.mxu0 0.0
        %533 = vmatpush1.xpose.msra.mxu0 0.0
        %534 = vmatprep.subr.mxu0 0.0
        %535 = vmatpush1.xpose.msra.mxu0 0.0
        %536 = vmatprep.subr.mxu0 0.0
        %537 = vmatpush1.xpose.msra.mxu0 0.0
        %538 = vmatprep.subr.mxu0 0.0
        %539 = vmatpush1.xpose.msra.mxu0 0.0
        %540 = vmatprep.subr.mxu0 0.0
        %541 = vmatpush1.xpose.msra.mxu0 0.0
        %542 = vmatprep.subr.mxu0 0.0
        %543 = vmatpush1.xpose.msra.mxu0 0.0
        %544 = vmatprep.subr.mxu0 0.0
        %545 = vmatpush1.xpose.msra.mxu0 0.0
        %546 = vmatprep.mubr.f32.mxu0 0.0
        %547 = vmatmul.mubr.f32.gmra.mrb[0].mxu0 %v478
        %v548 = vpop.f32.mrb[0].mxu0
        %v549 = vadd.f32 0.0, %v548
        %v550 = vpop.f32.mrb[0].mxu0
        %551 = vdwg.mxu0
        %v552 = vmul.f32 %v549, 0.35355338
        %v553 = vsel %vm137, %v552, -inf
        %v554 = vsel %vm141, %v553, -inf
        %555 = vmax.xlane.f32.xlu0 %v554
        %v556 = vpop.xlane.xlu0 %555
        %v557 = vsub.f32 %v553, %v556
        %v558 = vmul.f32 %v557, 1.442695
        %v559 = vpow.pop %v558
        %v560 = vsel %vm141, %v559, 0.0
        %561 = vadd.xlane.f32.xlu0 %v560
        %v562 = vpop.xlane.xlu0 %561
        %563 = vrot.lane.b32.xlu0 %v132, 48
        %v564 = vpop.permute.xlu0 %563
        %v567 = vsel %vm141, %v559, 0
        %569 = vmatprep.subr.mxu0 0.0
        %570 = vmatpush1.msra.mxu0 %v564
        %571 = vmatprep.subr.mxu0 0.0
        %572 = vmatpush1.msra.mxu0 0.0
        %573 = vmatprep.subr.mxu0 0.0
        %574 = vmatpush1.msra.mxu0 0.0
        %575 = vmatprep.subr.mxu0 0.0
        %576 = vmatpush1.msra.mxu0 0.0
        %577 = vmatprep.subr.mxu0 0.0
        %578 = vmatpush1.msra.mxu0 0.0
        %579 = vmatprep.subr.mxu0 0.0
        %580 = vmatpush1.msra.mxu0 0.0
        %581 = vmatprep.subr.mxu0 0.0
        %582 = vmatpush1.msra.mxu0 0.0
        %583 = vmatprep.subr.mxu0 0.0
        %584 = vmatpush1.msra.mxu0 0.0
        %585 = vmatprep.subr.mxu0 0.0
        %586 = vmatpush1.msra.mxu0 0.0
        %587 = vmatprep.subr.mxu0 0.0
        %588 = vmatpush1.msra.mxu0 0.0
        %589 = vmatprep.subr.mxu0 0.0
        %590 = vmatpush1.msra.mxu0 0.0
        %591 = vmatprep.subr.mxu0 0.0
        %592 = vmatpush1.msra.mxu0 0.0
        %593 = vmatprep.subr.mxu0 0.0
        %594 = vmatpush1.msra.mxu0 0.0
        %595 = vmatprep.subr.mxu0 0.0
        %596 = vmatpush1.msra.mxu0 0.0
        %597 = vmatprep.subr.mxu0 0.0
        %598 = vmatpush1.msra.mxu0 0.0
        %599 = vmatprep.subr.mxu0 0.0
        %600 = vmatpush1.msra.mxu0 0.0
        %601 = vmatprep.subr.mxu0 0.0
        %602 = vmatpush1.msra.mxu0 0.0
        %603 = vmatprep.subr.mxu0 0.0
        %604 = vmatpush1.msra.mxu0 0.0
        %605 = vmatprep.subr.mxu0 0.0
        %606 = vmatpush1.msra.mxu0 0.0
        %607 = vmatprep.subr.mxu0 0.0
        %608 = vmatpush1.msra.mxu0 0.0
        %609 = vmatprep.subr.mxu0 0.0
        %610 = vmatpush1.msra.mxu0 0.0
        %611 = vmatprep.subr.mxu0 0.0
        %612 = vmatpush1.msra.mxu0 0.0
        %613 = vmatprep.subr.mxu0 0.0
        %614 = vmatpush1.msra.mxu0 0.0
        %615 = vmatprep.subr.mxu0 0.0
        %616 = vmatpush1.msra.mxu0 0.0
        %617 = vmatprep.subr.mxu0 0.0
        %618 = vmatpush1.msra.mxu0 0.0
        %619 = vmatprep.subr.mxu0 0.0
        %620 = vmatpush1.msra.mxu0 0.0
        %621 = vmatprep.subr.mxu0 0.0
        %622 = vmatpush1.msra.mxu0 0.0
        %623 = vmatprep.subr.mxu0 0.0
        %624 = vmatpush1.msra.mxu0 0.0
        %625 = vmatprep.subr.mxu0 0.0
        %626 = vmatpush1.msra.mxu0 0.0
        %627 = vmatprep.subr.mxu0 0.0
        %628 = vmatpush1.msra.mxu0 0.0
        %629 = vmatprep.subr.mxu0 0.0
        %630 = vmatpush1.msra.mxu0 0.0
        %631 = vmatprep.subr.mxu0 0.0
        %632 = vmatpush1.msra.mxu0 0.0
        %633 = vmatprep.mubr.f32.mxu0 0.0
        %634 = vmatmul.mubr.f32.gmra.mrb[0].mxu0 %v567
        %v635 = vpop.f32.mrb[0].mxu0
        %v636 = vadd.f32 0.0, %v635
        %v637 = vpop.f32.mrb[0].mxu0
        %638 = vdwg.mxu0
        %v639 = vrcp.pop %v562
        %v640 = vmul.f32 1.0, %v639
        %v641 = vmul.f32 %v636, %v640
        %642 = vrot.lane.b32.xlu0 %v132, 104
        %v643 = vpop.permute.xlu0 %642
        %644 = vrot.lane.b32.xlu0 %v132, 72
        %v645 = vpop.permute.xlu0 %644
        %v646 = vsel %vm141, %v643, 0
        %v648 = vsel %vm141, %v645, 0
        %650 = vmatprep.subr.mxu0 0.0
        %651 = vmatpush1.xpose.msra.mxu0 %v648
        %652 = vmatprep.subr.mxu0 0.0
        %653 = vmatpush1.xpose.msra.mxu0 0.0
        %654 = vmatprep.subr.mxu0 0.0
        %655 = vmatpush1.xpose.msra.mxu0 0.0
        %656 = vmatprep.subr.mxu0 0.0
        %657 = vmatpush1.xpose.msra.mxu0 0.0
        %658 = vmatprep.subr.mxu0 0.0
        %659 = vmatpush1.xpose.msra.mxu0 0.0
        %660 = vmatprep.subr.mxu0 0.0
        %661 = vmatpush1.xpose.msra.mxu0 0.0
        %662 = vmatprep.subr.mxu0 0.0
        %663 = vmatpush1.xpose.msra.mxu0 0.0
        %664 = vmatprep.subr.mxu0 0.0
        %665 = vmatpush1.xpose.msra.mxu0 0.0
        %666 = vmatprep.subr.mxu0 0.0
        %667 = vmatpush1.xpose.msra.mxu0 0.0
        %668 = vmatprep.subr.mxu0 0.0
        %669 = vmatpush1.xpose.msra.mxu0 0.0
        %670 = vmatprep.subr.mxu0 0.0
        %671 = vmatpush1.xpose.msra.mxu0 0.0
        %672 = vmatprep.subr.mxu0 0.0
        %673 = vmatpush1.xpose.msra.mxu0 0.0
        %674 = vmatprep.subr.mxu0 0.0
        %675 = vmatpush1.xpose.msra.mxu0 0.0
        %676 = vmatprep.subr.mxu0 0.0
        %677 = vmatpush1.xpose.msra.mxu0 0.0
        %678 = vmatprep.subr.mxu0 0.0
        %679 = vmatpush1.xpose.msra.mxu0 0.0
        %680 = vmatprep.subr.mxu0 0.0
        %681 = vmatpush1.xpose.msra.mxu0 0.0
        %682 = vmatprep.subr.mxu0 0.0
        %683 = vmatpush1.xpose.msra.mxu0 0.0
        %684 = vmatprep.subr.mxu0 0.0
        %685 = vmatpush1.xpose.msra.mxu0 0.0
        %686 = vmatprep.subr.mxu0 0.0
        %687 = vmatpush1.xpose.msra.mxu0 0.0
        %688 = vmatprep.subr.mxu0 0.0
        %689 = vmatpush1.xpose.msra.mxu0 0.0
        %690 = vmatprep.subr.mxu0 0.0
        %691 = vmatpush1.xpose.msra.mxu0 0.0
        %692 = vmatprep.subr.mxu0 0.0
        %693 = vmatpush1.xpose.msra.mxu0 0.0
        %694 = vmatprep.subr.mxu0 0.0
        %695 = vmatpush1.xpose.msra.mxu0 0.0
        %696 = vmatprep.subr.mxu0 0.0
        %697 = vmatpush1.xpose.msra.mxu0 0.0
        %698 = vmatprep.subr.mxu0 0.0
        %699 = vmatpush1.xpose.msra.mxu0 0.0
        %700 = vmatprep.subr.mxu0 0.0
        %701 = vmatpush1.xpose.msra.mxu0 0.0
        %702 = vmatprep.subr.mxu0 0.0
        %703 = vmatpush1.xpose.msra.mxu0 0.0
        %704 = vmatprep.subr.mxu0 0.0
        %705 = vmatpush1.xpose.msra.mxu0 0.0
        %706 = vmatprep.subr.mxu0 0.0
        %707 = vmatpush1.xpose.msra.mxu0 0.0
        %708 = vmatprep.subr.mxu0 0.0
        %709 = vmatpush1.xpose.msra.mxu0 0.0
        %710 = vmatprep.subr.mxu0 0.0
        %711 = vmatpush1.xpose.msra.mxu0 0.0
        %712 = vmatprep.subr.mxu0 0.0
        %713 = vmatpush1.xpose.msra.mxu0 0.0
        %714 = vmatprep.mubr.f32.mxu0 0.0
        %715 = vmatmul.mubr.f32.gmra.mrb[0].mxu0 %v646
        %v716 = vpop.f32.mrb[0].mxu0
        %v717 = vadd.f32 0.0, %v716
        %v718 = vpop.f32.mrb[0].mxu0
        %719 = vdwg.mxu0
        %v720 = vmul.f32 %v717, 0.35355338
        %v721 = vsel %vm137, %v720, -inf
        %v722 = vsel %vm141, %v721, -inf
        %723 = vmax.xlane.f32.xlu0 %v722
        %v724 = vpop.xlane.xlu0 %723
        %v725 = vsub.f32 %v721, %v724
        %v726 = vmul.f32 %v725, 1.442695
        %v727 = vpow.pop %v726
        %v728 = vsel %vm141, %v727, 0.0
        %729 = vadd.xlane.f32.xlu0 %v728
        %v730 = vpop.xlane.xlu0 %729
        %731 = vrot.lane.b32.xlu0 %v132, 40
        %v732 = vpop.permute.xlu0 %731
        %v735 = vsel %vm141, %v727, 0
        %737 = vmatprep.subr.mxu0 0.0
        %738 = vmatpush1.msra.mxu0 %v732
        %739 = vmatprep.subr.mxu0 0.0
        %740 = vmatpush1.msra.mxu0 0.0
        %741 = vmatprep.subr.mxu0 0.0
        %742 = vmatpush1.msra.mxu0 0.0
        %743 = vmatprep.subr.mxu0 0.0
        %744 = vmatpush1.msra.mxu0 0.0
        %745 = vmatprep.subr.mxu0 0.0
        %746 = vmatpush1.msra.mxu0 0.0
        %747 = vmatprep.subr.mxu0 0.0
        %748 = vmatpush1.msra.mxu0 0.0
        %749 = vmatprep.subr.mxu0 0.0
        %750 = vmatpush1.msra.mxu0 0.0
        %751 = vmatprep.subr.mxu0 0.0
        %752 = vmatpush1.msra.mxu0 0.0
        %753 = vmatprep.subr.mxu0 0.0
        %754 = vmatpush1.msra.mxu0 0.0
        %755 = vmatprep.subr.mxu0 0.0
        %756 = vmatpush1.msra.mxu0 0.0
        %757 = vmatprep.subr.mxu0 0.0
        %758 = vmatpush1.msra.mxu0 0.0
        %759 = vmatprep.subr.mxu0 0.0
        %760 = vmatpush1.msra.mxu0 0.0
        %761 = vmatprep.subr.mxu0 0.0
        %762 = vmatpush1.msra.mxu0 0.0
        %763 = vmatprep.subr.mxu0 0.0
        %764 = vmatpush1.msra.mxu0 0.0
        %765 = vmatprep.subr.mxu0 0.0
        %766 = vmatpush1.msra.mxu0 0.0
        %767 = vmatprep.subr.mxu0 0.0
        %768 = vmatpush1.msra.mxu0 0.0
        %769 = vmatprep.subr.mxu0 0.0
        %770 = vmatpush1.msra.mxu0 0.0
        %771 = vmatprep.subr.mxu0 0.0
        %772 = vmatpush1.msra.mxu0 0.0
        %773 = vmatprep.subr.mxu0 0.0
        %774 = vmatpush1.msra.mxu0 0.0
        %775 = vmatprep.subr.mxu0 0.0
        %776 = vmatpush1.msra.mxu0 0.0
        %777 = vmatprep.subr.mxu0 0.0
        %778 = vmatpush1.msra.mxu0 0.0
        %779 = vmatprep.subr.mxu0 0.0
        %780 = vmatpush1.msra.mxu0 0.0
        %781 = vmatprep.subr.mxu0 0.0
        %782 = vmatpush1.msra.mxu0 0.0
        %783 = vmatprep.subr.mxu0 0.0
        %784 = vmatpush1.msra.mxu0 0.0
        %785 = vmatprep.subr.mxu0 0.0
        %786 = vmatpush1.msra.mxu0 0.0
        %787 = vmatprep.subr.mxu0 0.0
        %788 = vmatpush1.msra.mxu0 0.0
        %789 = vmatprep.subr.mxu0 0.0
        %790 = vmatpush1.msra.mxu0 0.0
        %791 = vmatprep.subr.mxu0 0.0
        %792 = vmatpush1.msra.mxu0 0.0
        %793 = vmatprep.subr.mxu0 0.0
        %794 = vmatpush1.msra.mxu0 0.0
        %795 = vmatprep.subr.mxu0 0.0
        %796 = vmatpush1.msra.mxu0 0.0
        %797 = vmatprep.subr.mxu0 0.0
        %798 = vmatpush1.msra.mxu0 0.0
        %799 = vmatprep.subr.mxu0 0.0
        %800 = vmatpush1.msra.mxu0 0.0
        %801 = vmatprep.mubr.f32.mxu0 0.0
        %802 = vmatmul.mubr.f32.gmra.mrb[0].mxu0 %v735
        %v803 = vpop.f32.mrb[0].mxu0
        %v804 = vadd.f32 0.0, %v803
        %v805 = vpop.f32.mrb[0].mxu0
        %806 = vdwg.mxu0
        %v807 = vrcp.pop %v730
        %v808 = vmul.f32 1.0, %v807
        %v809 = vmul.f32 %v804, %v808
        %811 = vrot.lane.b32.xlu0 %v473, 8
        %v812 = vpop.permute.xlu0 %811
        %815 = vrot.lane.b32.xlu0 %v641, 16
        %v816 = vpop.permute.xlu0 %815
        %819 = vrot.lane.b32.xlu0 %v809, 24
        %v820 = vpop.permute.xlu0 %819
        %v822 = vsel %vm141, %v305, %v812
        %vm823 = vcmask 130048
        %v824 = vsel %vm823, %v822, %v816
        %vm825 = vcmask 195584
        %v826 = vsel %vm825, %v824, %v820
        %vm827 = vcmask 261120
        %828 = vst.msk [vmem:[%s131] sm:$0xff] %vm827, %v826
        %s829 = sand.u32 %s52, 1
        %s830 = scalar_lea.sflag [#allocation4], %s829
        %s831 = sand.u32 %s52, 1
        %s832 = smul.addr %s831, 8
        %s833 = scalar_lea.vmem [#allocation5], %s832
        // Predicated region
        $region29: #{transformer_block_forward.5} parent=23 // pred_check
          %p834 = pneg %p62
        $region30: #{transformer_block_forward.5} parent=23 // pred_check_branch
          %836 = sbr.rel (%p834) target = $region32
        $region31: #{transformer_block_forward.5} parent=23 // pred_region
          %s838 = ssub.s32 128, 128
          %839 = vsyncadd %s830, %s838
          %s840 = smul.addr %s18, 128
          %s841 = scalar_lea.hbm %s1, %s840
          %s843 = sshll.u32 %s833, 4
          %s844 = int_to_ptr.vmem [resolvable:$true] %s843
          %846 = dma.vmem_to_hbm [thread:$0]  %s844, 128, %s841, %s830
        $region32: #{transformer_block_forward.5} parent=23 // pred_fallthru
          _
      $region24: #{transformer_block_forward.5} parent=5 // pred_fallthru
        _
      %p847 = scmp.le.s32.totalorder 2, %s13
      // Predicated region
      $region33: #{transformer_block_forward.5} parent=5 // pred_check
        %p848 = pneg %p847
      $region34: #{transformer_block_forward.5} parent=5 // pred_check_branch
        %850 = sbr.rel (%p848) target = $region36
      $region35: #{transformer_block_forward.5} parent=5 // pred_region
        %s851 = ssub.s32 %s13, 2
        // Predicated region
        $region37: #{transformer_block_forward.5} parent=35 // pred_check
          %p852 = pneg %p68
        $region38: #{transformer_block_forward.5} parent=35 // pred_check_branch
          %854 = sbr.rel (%p852) target = $region40
        $region39: #{transformer_block_forward.5} parent=35 // pred_region
          %s855 = sand.u32 %s53, 1
          %s856 = scalar_lea.sflag [#allocation4], %s855
          %s857 = sand.u32 %s53, 1
          %s858 = smul.addr %s857, 8
          %s859 = scalar_lea.vmem [#allocation5], %s858
          %860 = dma.done %s856, 128
        $region40: #{transformer_block_forward.5} parent=35 // pred_fallthru
          _
      $region36: #{transformer_block_forward.5} parent=5 // pred_fallthru
        _
    $region6: #{transformer_block_forward.5} parent=1 // loop_footer
      %s17 = sadd.s32 1, %s13
    $region7: #{transformer_block_forward.5} parent=1 // loop_footer_branch
      %12 = sbr.rel target = $region3
    $region8: #{transformer_block_forward.5} parent=1 // loop_exit
      _
    %861 = vsyncpa [#allocation3], 1
    %s862 = scalar_lea.sflag [#allocation3], 1
    %863 = vsyncpa %s862, 1
    %864 = vsyncpa [#allocation4], 1
    %s865 = scalar_lea.sflag [#allocation4], 1
    %866 = vsyncpa %s865, 1

// kernel: transformer_block_forward.7
$region0: #{transformer_block_forward.7}
  #allocation0 [shape = 'u32[]', space=smem, size = 0x4, offset = 0x4, fixed_abs, tag = 'smem constant byte address 0x4 - core index']
  #allocation1 [shape = 'u32[144,128]{1,0:T(1,128)}', space=vmem, size = 0x12000, scoped, tag = 'internal scratch']
  #allocation2 [shape = 'f32[16,32]{1,0:T(8,128)}', space=vmem, size = 0x2000, scoped, tag = 'scratch operand']
  #allocation3 [shape = 'f32[16,32]{1,0:T(8,128)}', space=vmem, size = 0x2000, scoped, tag = 'scratch operand']
  %s0 = inlined_call_operand.hbm [shape: f32[16,32], index: 0, kind: input, shape index: {}]
  %s1 = inlined_call_operand.hbm [shape: f32[1,32], index: 1, kind: input, shape index: {}]
  %s2 = inlined_call_operand.hbm [shape: f32[1,32], index: 2, kind: input, shape index: {}]
  %s3 = inlined_call_operand.hbm [shape: f32[32,128], index: 3, kind: input, shape index: {}]
  %s4 = inlined_call_operand.hbm [shape: f32[1,128], index: 4, kind: input, shape index: {}]
  %s5 = inlined_call_operand.hbm [shape: f32[128,32], index: 5, kind: input, shape index: {}]
  %s6 = inlined_call_operand.hbm [shape: f32[1,32], index: 6, kind: input, shape index: {}]
  %s7 = inlined_call_operand.hbm [shape: f32[16,32], index: 7, kind: output, shape index: {}]
  %s8 = sld [smem:[#allocation0]]
  $region74: #{transformer_block_forward.7} parent=0
    _
  %s10 = ssub.s32 1, %s8
  %s11 = scalar_select 0, %s10, %s8
  $region1: #{transformer_block_forward.7} parent=0
    #allocation4 [shape = 'u8[8192]{0}', space=vmem, size = 0x2000, scoped, tag = 'input window, operand 0, single buffered']
    #allocation5 [shape = 's32[1]{0}', space=sflag, size = 0x4, scoped, tag = 'scoped memory for transformer_block_forward.7']
    #allocation6 [shape = 's32[1]{0}', space=sflag, size = 0x4, scoped, tag = 'scoped memory for transformer_block_forward.7']
    #allocation7 [shape = 'u8[512]{0}', space=vmem, size = 0x400, scoped, tag = 'input window, operand 1, single buffered']
    #allocation8 [shape = 's32[1]{0}', space=sflag, size = 0x4, scoped, tag = 'scoped memory for transformer_block_forward.7']
    #allocation9 [shape = 'u8[512]{0}', space=vmem, size = 0x400, scoped, tag = 'input window, operand 2, single buffered']
    #allocation10 [shape = 'u8[16384]{0}', space=vmem, size = 0x4000, scoped, tag = 'input window, operand 3, single buffered']
    #allocation11 [shape = 's32[1]{0}', space=sflag, size = 0x4, scoped, tag = 'scoped memory for transformer_block_forward.7']
    #allocation12 [shape = 'u8[512]{0}', space=vmem, size = 0x400, scoped, tag = 'input window, operand 4, single buffered']
    #allocation13 [shape = 'u8[65536]{0}', space=vmem, size = 0x10000, scoped, tag = 'input window, operand 5, single buffered']
    #allocation14 [shape = 's32[1]{0}', space=sflag, size = 0x4, scoped, tag = 'scoped memory for transformer_block_forward.7']
    #allocation15 [shape = 'u8[512]{0}', space=vmem, size = 0x400, scoped, tag = 'input window, operand 6, single buffered']
    #allocation16 [shape = 'u8[8192]{0}', space=vmem, size = 0x2000, scoped, tag = 'output window, operand 0, single buffered']
    %12 = vsyncpa [#allocation5], 0
    %13 = vsyncpa [#allocation8], 0
    %14 = vsyncpa [#allocation11], 0
    %15 = vsyncpa [#allocation14], 0
    %16 = vsyncpa [#allocation6], 0
    // Predicated region
    $region2: #{transformer_block_forward.7} parent=1 // pred_check
      _
    $region3: #{transformer_block_forward.7} parent=1 // pred_check_branch
      %18 = sbr.rel (0) target = $region5
    $region4: #{transformer_block_forward.7} parent=1 // pred_region
      %s20 = ssub.s32 256, 256
      %21 = vsyncadd [#allocation5], %s20
      %s22 = sshll.u32 [#allocation4], 4
      %s23 = int_to_ptr.vmem [resolvable:$true] %s22
      %28 = dma.hbm_to_vmem [thread:$0]  %s0, 256, %s23, [#allocation5], 128, 128, 8
    $region5: #{transformer_block_forward.7} parent=1 // pred_fallthru
      _
    // Predicated region
    $region6: #{transformer_block_forward.7} parent=1 // pred_check
      _
    $region7: #{transformer_block_forward.7} parent=1 // pred_check_branch
      %30 = sbr.rel (0) target = $region9
    $region8: #{transformer_block_forward.7} parent=1 // pred_region
      %s32 = ssub.s32 16, 16
      %33 = vsyncadd [#allocation8], %s32
      %s35 = sshll.u32 [#allocation7], 4
      %s36 = int_to_ptr.vmem [resolvable:$true] %s35
      %38 = dma.hbm_to_vmem [thread:$0]  %s1, 16, %s36, [#allocation8]
    $region9: #{transformer_block_forward.7} parent=1 // pred_fallthru
      _
    // Predicated region
    $region10: #{transformer_block_forward.7} parent=1 // pred_check
      _
    $region11: #{transformer_block_forward.7} parent=1 // pred_check_branch
      %40 = sbr.rel (0) target = $region13
    $region12: #{transformer_block_forward.7} parent=1 // pred_region
      %s42 = ssub.s32 16, 16
      %43 = vsyncadd [#allocation8], %s42
      %s45 = sshll.u32 [#allocation9], 4
      %s46 = int_to_ptr.vmem [resolvable:$true] %s45
      %48 = dma.hbm_to_vmem [thread:$0]  %s2, 16, %s46, [#allocation8]
    $region13: #{transformer_block_forward.7} parent=1 // pred_fallthru
      _
    // Predicated region
    $region14: #{transformer_block_forward.7} parent=1 // pred_check
      _
    $region15: #{transformer_block_forward.7} parent=1 // pred_check_branch
      %50 = sbr.rel (0) target = $region17
    $region16: #{transformer_block_forward.7} parent=1 // pred_region
      %s52 = ssub.s32 512, 512
      %53 = vsyncadd [#allocation11], %s52
      %s54 = sshll.u32 [#allocation10], 4
      %s55 = int_to_ptr.vmem [resolvable:$true] %s54
      %60 = dma.hbm_to_vmem [thread:$0]  %s3, 512, %s55, [#allocation11], 128, 128, 8
    $region17: #{transformer_block_forward.7} parent=1 // pred_fallthru
      _
    // Predicated region
    $region18: #{transformer_block_forward.7} parent=1 // pred_check
      _
    $region19: #{transformer_block_forward.7} parent=1 // pred_check_branch
      %62 = sbr.rel (0) target = $region21
    $region20: #{transformer_block_forward.7} parent=1 // pred_region
      %s64 = ssub.s32 16, 16
      %65 = vsyncadd [#allocation11], %s64
      %s67 = sshll.u32 [#allocation12], 4
      %s68 = int_to_ptr.vmem [resolvable:$true] %s67
      %70 = dma.hbm_to_vmem [thread:$0]  %s4, 16, %s68, [#allocation11]
    $region21: #{transformer_block_forward.7} parent=1 // pred_fallthru
      _
    // Predicated region
    $region22: #{transformer_block_forward.7} parent=1 // pred_check
      _
    $region23: #{transformer_block_forward.7} parent=1 // pred_check_branch
      %72 = sbr.rel (0) target = $region25
    $region24: #{transformer_block_forward.7} parent=1 // pred_region
      %s74 = ssub.s32 2048, 2048
      %75 = vsyncadd [#allocation14], %s74
      %s76 = sshll.u32 [#allocation13], 4
      %s77 = int_to_ptr.vmem [resolvable:$true] %s76
      %82 = dma.hbm_to_vmem [thread:$0]  %s5, 2048, %s77, [#allocation14], 128, 128, 8
    $region25: #{transformer_block_forward.7} parent=1 // pred_fallthru
      _
    // Predicated region
    $region26: #{transformer_block_forward.7} parent=1 // pred_check
      _
    $region27: #{transformer_block_forward.7} parent=1 // pred_check_branch
      %84 = sbr.rel (0) target = $region29
    $region28: #{transformer_block_forward.7} parent=1 // pred_region
      %s86 = ssub.s32 16, 16
      %87 = vsyncadd [#allocation14], %s86
      %s89 = sshll.u32 [#allocation15], 4
      %s90 = int_to_ptr.vmem [resolvable:$true] %s89
      %92 = dma.hbm_to_vmem [thread:$0]  %s6, 16, %s90, [#allocation14]
    $region29: #{transformer_block_forward.7} parent=1 // pred_fallthru
      _
    // Predicated region
    $region30: #{transformer_block_forward.7} parent=1 // pred_check
      _
    $region31: #{transformer_block_forward.7} parent=1 // pred_check_branch
      %94 = sbr.rel (0) target = $region33
    $region32: #{transformer_block_forward.7} parent=1 // pred_region
      %95 = dma.done [#allocation5], 256
    $region33: #{transformer_block_forward.7} parent=1 // pred_fallthru
      _
    // Predicated region
    $region34: #{transformer_block_forward.7} parent=1 // pred_check
      _
    $region35: #{transformer_block_forward.7} parent=1 // pred_check_branch
      %97 = sbr.rel (0) target = $region37
    $region36: #{transformer_block_forward.7} parent=1 // pred_region
      %98 = dma.done [#allocation8], 16
    $region37: #{transformer_block_forward.7} parent=1 // pred_fallthru
      _
    // Predicated region
    $region38: #{transformer_block_forward.7} parent=1 // pred_check
      _
    $region39: #{transformer_block_forward.7} parent=1 // pred_check_branch
      %100 = sbr.rel (0) target = $region41
    $region40: #{transformer_block_forward.7} parent=1 // pred_region
      %101 = dma.done [#allocation8], 16
    $region41: #{transformer_block_forward.7} parent=1 // pred_fallthru
      _
    // Predicated region
    $region42: #{transformer_block_forward.7} parent=1 // pred_check
      _
    $region43: #{transformer_block_forward.7} parent=1 // pred_check_branch
      %103 = sbr.rel (0) target = $region45
    $region44: #{transformer_block_forward.7} parent=1 // pred_region
      %104 = dma.done [#allocation11], 512
    $region45: #{transformer_block_forward.7} parent=1 // pred_fallthru
      _
    // Predicated region
    $region46: #{transformer_block_forward.7} parent=1 // pred_check
      _
    $region47: #{transformer_block_forward.7} parent=1 // pred_check_branch
      %106 = sbr.rel (0) target = $region49
    $region48: #{transformer_block_forward.7} parent=1 // pred_region
      %107 = dma.done [#allocation11], 16
    $region49: #{transformer_block_forward.7} parent=1 // pred_fallthru
      _
    // Predicated region
    $region50: #{transformer_block_forward.7} parent=1 // pred_check
      _
    $region51: #{transformer_block_forward.7} parent=1 // pred_check_branch
      %109 = sbr.rel (0) target = $region53
    $region52: #{transformer_block_forward.7} parent=1 // pred_region
      %110 = dma.done [#allocation14], 2048
    $region53: #{transformer_block_forward.7} parent=1 // pred_fallthru
      _
    // Predicated region
    $region54: #{transformer_block_forward.7} parent=1 // pred_check
      _
    $region55: #{transformer_block_forward.7} parent=1 // pred_check_branch
      %112 = sbr.rel (0) target = $region57
    $region56: #{transformer_block_forward.7} parent=1 // pred_region
      %113 = dma.done [#allocation14], 16
    $region57: #{transformer_block_forward.7} parent=1 // pred_fallthru
      _
    %p114 = scmp.eq.s32.totalorder 0, 0
    // Predicated region
    $region58: #{transformer_block_forward.7} parent=1 // pred_check
      %p115 = pneg %p114
    $region59: #{transformer_block_forward.7} parent=1 // pred_check_branch
      %117 = sbr.rel (%p115) target = $region61
    $region60: #{transformer_block_forward.7} parent=1 // pred_region
      %v118 = vld [vmem:[#allocation4] sm:$0xff]
      %v119 = vld [vmem:[#allocation4 + $0x8] sm:$0xff]
      %vm120 = vcmask 261120
      %v121 = vsel %vm120, %v118, 0.0
      %122 = vadd.xlane.f32.xlu0 %v121
      %v123 = vpop.xlane.xlu0 %122
      %v124 = vsel %vm120, %v119, 0.0
      %125 = vadd.xlane.f32.xlu0 %v124
      %v126 = vpop.xlane.xlu0 %125
      %v127 = vrcp.pop 32.0
      %v128 = vmul.f32 %v123, %v127
      %v129 = vmul.f32 %v126, %v127
      %v130 = vsub.f32 %v118, %v128
      %v131 = vsub.f32 %v119, %v129
      %v132 = vmul.f32 %v130, %v130
      %v133 = vmul.f32 %v131, %v131
      %v134 = vsel %vm120, %v132, 0.0
      %135 = vadd.xlane.f32.xlu0 %v134
      %v136 = vpop.xlane.xlu0 %135
      %v137 = vsel %vm120, %v133, 0.0
      %138 = vadd.xlane.f32.xlu0 %v137
      %v139 = vpop.xlane.xlu0 %138
      %v140 = vmul.f32 %v136, %v127
      %v141 = vmul.f32 %v139, %v127
      %v142 = vadd.f32 %v140, 1e-05
      %v143 = vadd.f32 %v141, 1e-05
      %v144 = vrsqrt.pop %v142
      %v145 = vrsqrt.pop %v143
      %v146 = vmul.f32 %v130, %v144
      %v147 = vmul.f32 %v131, %v145
      %v148 = vld [vmem:[#allocation7] sm:$0x1]
      %v150 = vlaneseq
      %v151 = vshrl.u32 %v150, 7
      %v152 = vsub.s32 0, %v151
      %v153 = vrot.slane %v148, %v152
      %v155 = vmul.f32 %v146, %v153
      %v156 = vmul.f32 %v147, %v153
      %v157 = vld [vmem:[#allocation9] sm:$0x1]
      %v159 = vlaneseq
      %v160 = vshrl.u32 %v159, 7
      %v161 = vsub.s32 0, %v160
      %v162 = vrot.slane %v157, %v161
      %v164 = vadd.f32 %v155, %v162
      %v165 = vadd.f32 %v156, %v162
      %166 = vst.msk [vmem:[#allocation2] sm:$0xff] %vm120, %v164
      %167 = vst.msk [vmem:[#allocation2 + $0x8] sm:$0xff] %vm120, %v165
      %168 = vst.msk [vmem:[#allocation3] sm:$0xff] %vm120, 0.0
      %169 = vst.msk [vmem:[#allocation3 + $0x8] sm:$0xff] %vm120, 0.0
    $region61: #{transformer_block_forward.7} parent=1 // pred_fallthru
      _
    %v170 = vld [vmem:[#allocation2] sm:$0xff]
    %v171 = vld [vmem:[#allocation2 + $0x8] sm:$0xff]
    %v172 = vld [vmem:[#allocation10] sm:$0xff]
    %v173 = vld [vmem:[#allocation10 + $0x8] sm:$0xff]
    %v174 = vld [vmem:[#allocation10 + $0x10] sm:$0xff]
    %v175 = vld [vmem:[#allocation10 + $0x18] sm:$0xff]
    %v176 = vld [vmem:[#allocation12] sm:$0x1]
    %v178 = vlaneseq
    %v179 = vshrl.u32 %v178, 7
    %v180 = vsub.s32 0, %v179
    %v181 = vrot.slane %v176, %v180
    %vm183 = vcmask 261120
    %v185 = vsel %vm183, %v170, 0
    %v188 = vsel %vm183, %v171, 0
    %190 = vmatprep.subr.mxu0 0.0
    %191 = vmatpush1.msra.mxu0 %v172
    %192 = vmatprep.subr.mxu0 0.0
    %193 = vmatpush1.msra.mxu0 %v173
    %194 = vmatprep.subr.mxu0 0.0
    %195 = vmatpush1.msra.mxu0 %v174
    %196 = vmatprep.subr.mxu0 0.0
    %197 = vmatpush1.msra.mxu0 %v175
    %198 = vmatprep.subr.mxu0 0.0
    %199 = vmatpush1.msra.mxu0 0.0
    %200 = vmatprep.subr.mxu0 0.0
    %201 = vmatpush1.msra.mxu0 0.0
    %202 = vmatprep.subr.mxu0 0.0
    %203 = vmatpush1.msra.mxu0 0.0
    %204 = vmatprep.subr.mxu0 0.0
    %205 = vmatpush1.msra.mxu0 0.0
    %206 = vmatprep.subr.mxu0 0.0
    %207 = vmatpush1.msra.mxu0 0.0
    %208 = vmatprep.subr.mxu0 0.0
    %209 = vmatpush1.msra.mxu0 0.0
    %210 = vmatprep.subr.mxu0 0.0
    %211 = vmatpush1.msra.mxu0 0.0
    %212 = vmatprep.subr.mxu0 0.0
    %213 = vmatpush1.msra.mxu0 0.0
    %214 = vmatprep.subr.mxu0 0.0
    %215 = vmatpush1.msra.mxu0 0.0
    %216 = vmatprep.subr.mxu0 0.0
    %217 = vmatpush1.msra.mxu0 0.0
    %218 = vmatprep.subr.mxu0 0.0
    %219 = vmatpush1.msra.mxu0 0.0
    %220 = vmatprep.subr.mxu0 0.0
    %221 = vmatpush1.msra.mxu0 0.0
    %222 = vmatprep.subr.mxu0 0.0
    %223 = vmatpush1.msra.mxu0 0.0
    %224 = vmatprep.subr.mxu0 0.0
    %225 = vmatpush1.msra.mxu0 0.0
    %226 = vmatprep.subr.mxu0 0.0
    %227 = vmatpush1.msra.mxu0 0.0
    %228 = vmatprep.subr.mxu0 0.0
    %229 = vmatpush1.msra.mxu0 0.0
    %230 = vmatprep.subr.mxu0 0.0
    %231 = vmatpush1.msra.mxu0 0.0
    %232 = vmatprep.subr.mxu0 0.0
    %233 = vmatpush1.msra.mxu0 0.0
    %234 = vmatprep.subr.mxu0 0.0
    %235 = vmatpush1.msra.mxu0 0.0
    %236 = vmatprep.subr.mxu0 0.0
    %237 = vmatpush1.msra.mxu0 0.0
    %238 = vmatprep.subr.mxu0 0.0
    %239 = vmatpush1.msra.mxu0 0.0
    %240 = vmatprep.subr.mxu0 0.0
    %241 = vmatpush1.msra.mxu0 0.0
    %242 = vmatprep.subr.mxu0 0.0
    %243 = vmatpush1.msra.mxu0 0.0
    %244 = vmatprep.subr.mxu0 0.0
    %245 = vmatpush1.msra.mxu0 0.0
    %246 = vmatprep.subr.mxu0 0.0
    %247 = vmatpush1.msra.mxu0 0.0
    %248 = vmatprep.subr.mxu0 0.0
    %249 = vmatpush1.msra.mxu0 0.0
    %250 = vmatprep.subr.mxu0 0.0
    %251 = vmatpush1.msra.mxu0 0.0
    %252 = vmatprep.subr.mxu0 0.0
    %253 = vmatpush1.msra.mxu0 0.0
    %254 = vmatprep.mubr.f32.mxu0 0.0
    %255 = vmatmul.mubr.f32.gmra.mrb[0].mxu0 %v185
    %v256 = vpop.f32.mrb[0].mxu0
    %v257 = vadd.f32 %v181, %v256
    %v258 = vpop.f32.mrb[0].mxu0
    %259 = vmatprep.mubr.f32.mxu0 0.0
    %260 = vmatmul.mubr.f32.gmra.mrb[0].mxu0 %v188
    %v261 = vpop.f32.mrb[0].mxu0
    %v262 = vadd.f32 %v181, %v261
    %v263 = vpop.f32.mrb[0].mxu0
    %264 = vdwg.mxu0
    %v265 = vmul.f32 %v257, 0.5
    %v266 = vmul.f32 %v262, 0.5
    %v267 = vmul.f32 %v257, 0.70710677
    %v268 = vmul.f32 %v262, 0.70710677
    %v269 = verf.f32.pop %v267
    %v270 = verf.f32.pop %v268
    %v271 = vadd.f32 %v269, 1.0
    %v272 = vadd.f32 %v270, 1.0
    %v273 = vmul.f32 %v265, %v271
    %v274 = vmul.f32 %v266, %v272
    %v275 = vld [vmem:[#allocation3] sm:$0xff]
    %v276 = vld [vmem:[#allocation3 + $0x8] sm:$0xff]
    %v277 = vld [vmem:[#allocation13] sm:$0xff]
    %v278 = vld [vmem:[#allocation13 + $0x8] sm:$0xff]
    %v279 = vld [vmem:[#allocation13 + $0x10] sm:$0xff]
    %v280 = vld [vmem:[#allocation13 + $0x18] sm:$0xff]
    %v281 = vld [vmem:[#allocation13 + $0x20] sm:$0xff]
    %v282 = vld [vmem:[#allocation13 + $0x28] sm:$0xff]
    %v283 = vld [vmem:[#allocation13 + $0x30] sm:$0xff]
    %v284 = vld [vmem:[#allocation13 + $0x38] sm:$0xff]
    %v285 = vld [vmem:[#allocation13 + $0x40] sm:$0xff]
    %v286 = vld [vmem:[#allocation13 + $0x48] sm:$0xff]
    %v287 = vld [vmem:[#allocation13 + $0x50] sm:$0xff]
    %v288 = vld [vmem:[#allocation13 + $0x58] sm:$0xff]
    %v289 = vld [vmem:[#allocation13 + $0x60] sm:$0xff]
    %v290 = vld [vmem:[#allocation13 + $0x68] sm:$0xff]
    %v291 = vld [vmem:[#allocation13 + $0x70] sm:$0xff]
    %v292 = vld [vmem:[#allocation13 + $0x78] sm:$0xff]
    %293 = vmatprep.subr.mxu0 0.0
    %294 = vmatpush1.msra.mxu0 %v277
    %295 = vmatprep.subr.mxu0 0.0
    %296 = vmatpush1.msra.mxu0 %v278
    %297 = vmatprep.subr.mxu0 0.0
    %298 = vmatpush1.msra.mxu0 %v279
    %299 = vmatprep.subr.mxu0 0.0
    %300 = vmatpush1.msra.mxu0 %v280
    %301 = vmatprep.subr.mxu0 0.0
    %302 = vmatpush1.msra.mxu0 %v281
    %303 = vmatprep.subr.mxu0 0.0
    %304 = vmatpush1.msra.mxu0 %v282
    %305 = vmatprep.subr.mxu0 0.0
    %306 = vmatpush1.msra.mxu0 %v283
    %307 = vmatprep.subr.mxu0 0.0
    %308 = vmatpush1.msra.mxu0 %v284
    %309 = vmatprep.subr.mxu0 0.0
    %310 = vmatpush1.msra.mxu0 %v285
    %311 = vmatprep.subr.mxu0 0.0
    %312 = vmatpush1.msra.mxu0 %v286
    %313 = vmatprep.subr.mxu0 0.0
    %314 = vmatpush1.msra.mxu0 %v287
    %315 = vmatprep.subr.mxu0 0.0
    %316 = vmatpush1.msra.mxu0 %v288
    %317 = vmatprep.subr.mxu0 0.0
    %318 = vmatpush1.msra.mxu0 %v289
    %319 = vmatprep.subr.mxu0 0.0
    %320 = vmatpush1.msra.mxu0 %v290
    %321 = vmatprep.subr.mxu0 0.0
    %322 = vmatpush1.msra.mxu0 %v291
    %323 = vmatprep.subr.mxu0 0.0
    %324 = vmatpush1.msra.mxu0 %v292
    %325 = vmatprep.subr.mxu0 0.0
    %326 = vmatpush1.msra.mxu0 0.0
    %327 = vmatprep.subr.mxu0 0.0
    %328 = vmatpush1.msra.mxu0 0.0
    %329 = vmatprep.subr.mxu0 0.0
    %330 = vmatpush1.msra.mxu0 0.0
    %331 = vmatprep.subr.mxu0 0.0
    %332 = vmatpush1.msra.mxu0 0.0
    %333 = vmatprep.subr.mxu0 0.0
    %334 = vmatpush1.msra.mxu0 0.0
    %335 = vmatprep.subr.mxu0 0.0
    %336 = vmatpush1.msra.mxu0 0.0
    %337 = vmatprep.subr.mxu0 0.0
    %338 = vmatpush1.msra.mxu0 0.0
    %339 = vmatprep.subr.mxu0 0.0
    %340 = vmatpush1.msra.mxu0 0.0
    %341 = vmatprep.subr.mxu0 0.0
    %342 = vmatpush1.msra.mxu0 0.0
    %343 = vmatprep.subr.mxu0 0.0
    %344 = vmatpush1.msra.mxu0 0.0
    %345 = vmatprep.subr.mxu0 0.0
    %346 = vmatpush1.msra.mxu0 0.0
    %347 = vmatprep.subr.mxu0 0.0
    %348 = vmatpush1.msra.mxu0 0.0
    %349 = vmatprep.subr.mxu0 0.0
    %350 = vmatpush1.msra.mxu0 0.0
    %351 = vmatprep.subr.mxu0 0.0
    %352 = vmatpush1.msra.mxu0 0.0
    %353 = vmatprep.subr.mxu0 0.0
    %354 = vmatpush1.msra.mxu0 0.0
    %355 = vmatprep.subr.mxu0 0.0
    %356 = vmatpush1.msra.mxu0 0.0
    %357 = vmatprep.mubr.f32.mxu0 0.0
    %358 = vmatmul.mubr.f32.gmra.mrb[0].mxu0 %v273
    %v359 = vpop.f32.mrb[0].mxu0
    %v360 = vadd.f32 0.0, %v359
    %v361 = vpop.f32.mrb[0].mxu0
    %362 = vmatprep.mubr.f32.mxu0 0.0
    %363 = vmatmul.mubr.f32.gmra.mrb[0].mxu0 %v274
    %v364 = vpop.f32.mrb[0].mxu0
    %v365 = vadd.f32 0.0, %v364
    %v366 = vpop.f32.mrb[0].mxu0
    %367 = vdwg.mxu0
    %v368 = vadd.f32 %v275, %v360
    %v369 = vadd.f32 %v276, %v365
    %370 = vst.msk [vmem:[#allocation3] sm:$0xff] %vm183, %v368
    %371 = vst.msk [vmem:[#allocation3 + $0x8] sm:$0xff] %vm183, %v369
    // Predicated region
    $region62: #{transformer_block_forward.7} parent=1 // pred_check
      %p372 = pneg %p114
    $region63: #{transformer_block_forward.7} parent=1 // pred_check_branch
      %374 = sbr.rel (%p372) target = $region65
    $region64: #{transformer_block_forward.7} parent=1 // pred_region
      %v375 = vld [vmem:[#allocation3] sm:$0xff]
      %v376 = vld [vmem:[#allocation3 + $0x8] sm:$0xff]
      %v377 = vld [vmem:[#allocation15] sm:$0x1]
      %v379 = vlaneseq
      %v380 = vshrl.u32 %v379, 7
      %v381 = vsub.s32 0, %v380
      %v382 = vrot.slane %v377, %v381
      %v384 = vadd.f32 %v375, %v382
      %v385 = vadd.f32 %v376, %v382
      %v386 = vld [vmem:[#allocation4] sm:$0xff]
      %v387 = vld [vmem:[#allocation4 + $0x8] sm:$0xff]
      %v388 = vadd.f32 %v384, %v386
      %v389 = vadd.f32 %v385, %v387
      %390 = vst.msk [vmem:[#allocation16] sm:$0xff] %vm183, %v388
      %391 = vst.msk [vmem:[#allocation16 + $0x8] sm:$0xff] %vm183, %v389
    $region65: #{transformer_block_forward.7} parent=1 // pred_fallthru
      _
    // Predicated region
    $region66: #{transformer_block_forward.7} parent=1 // pred_check
      _
    $region67: #{transformer_block_forward.7} parent=1 // pred_check_branch
      %393 = sbr.rel (0) target = $region69
    $region68: #{transformer_block_forward.7} parent=1 // pred_region
      %s395 = ssub.s32 256, 256
      %396 = vsyncadd [#allocation6], %s395
      %s397 = sshll.u32 [#allocation16], 4
      %s398 = int_to_ptr.vmem [resolvable:$true] %s397
      %403 = dma.vmem_to_hbm [thread:$0]  %s398, 256, %s7, [#allocation6], 128, 128, 8
    $region69: #{transformer_block_forward.7} parent=1 // pred_fallthru
      _
    // Predicated region
    $region70: #{transformer_block_forward.7} parent=1 // pred_check
      _
    $region71: #{transformer_block_forward.7} parent=1 // pred_check_branch
      %405 = sbr.rel (0) target = $region73
    $region72: #{transformer_block_forward.7} parent=1 // pred_region
      %406 = dma.done [#allocation6], 256
    $region73: #{transformer_block_forward.7} parent=1 // pred_fallthru
      _
    %407 = vsyncpa [#allocation5], 1
    %408 = vsyncpa [#allocation8], 1
    %409 = vsyncpa [#allocation11], 1
    %410 = vsyncpa [#allocation14], 1
    %411 = vsyncpa [#allocation6], 1

</llo_original>
